<compile_context>
chip_gen: v5e
topology: v5e:2x2
jax: 0.10.0
libtpu: 0.0.40
codegen_flags: <defaults>
</compile_context>

<pallas_src>
from string import punctuation

import numpy as np

import jax
import jax.numpy as jnp
from jax.experimental import pallas as pl
from jax.experimental.pallas import tpu as pltpu

_COLS = 1024          # lane-dense last dim (multiple of 128)
_ROW_ALIGN = 32       # int8 sublane packing -> rows padded to a multiple of 32
_MAX_BLOCK_ROWS = 512 # 512 x 1024 int8 = 512 KiB per buffer; safe on v5e/v6e/v7x
_PAD_CODE = 32        # space (dropped by host-side whitespace split)
_SENTINEL = 0         # punctuation positions are rewritten to NUL


def _normalize_kernel(codes_ref, out_ref):
    # Load int8 tile, do the arithmetic in-register at i32, store back int8.
    c = codes_ref[...].astype(jnp.int32)
    # lowercase: 'A' (65) .. 'Z' (90) -> +32
    is_upper = jnp.logical_and(c >= 65, c <= 90)
    lc = jnp.where(is_upper, c + 32, c)
    # string.punctuation membership via ASCII range checks
    # (lowercasing first is safe: 65-90 -> 97-122 never lands in these ranges)
    is_punct = (
        jnp.logical_and(lc >= 33, lc <= 47)
        | jnp.logical_and(lc >= 58, lc <= 64)
        | jnp.logical_and(lc >= 91, lc <= 96)
        | jnp.logical_and(lc >= 123, lc <= 126)
    )
    out_ref[...] = jnp.where(is_punct, _SENTINEL, lc).astype(jnp.int8)


def _choose_block_rows(rows: int) -> int:
    """Largest multiple-of-32 divisor of `rows` that is <= _MAX_BLOCK_ROWS."""
    best = _ROW_ALIGN
    d = _ROW_ALIGN
    while d <= min(rows, _MAX_BLOCK_ROWS):
        if rows % d == 0:
            best = d
        d += _ROW_ALIGN
    return best


def normalize_chars(codes: jax.Array) -> jax.Array:
    """codes: int8 array of shape (R, 1024), R % 32 == 0.

    Returns an int8 array of the same shape: lowercased, with every
    punctuation character replaced by the sentinel 0.
    """
    assert codes.ndim == 2
    R, C = codes.shape
    assert R % _ROW_ALIGN == 0 and C == _COLS, (R, C)
    assert codes.dtype == jnp.int8

    block_rows = _choose_block_rows(R)
    grid = (R // block_rows,)
    spec = pl.BlockSpec((block_rows, C), lambda i: (i, 0))
    return pl.pallas_call(
        _normalize_kernel,
        out_shape=jax.ShapeDtypeStruct((R, C), jnp.int8),
        grid=grid,
        in_specs=[spec],
        out_specs=spec,
        compiler_params=pltpu.CompilerParams(
            dimension_semantics=("parallel",)
        ),
    )(codes)


# ----------------------- host-side glue (no tensor compute) -----------------

def encode_text(text: str) -> jax.Array:
    """Pack a python string into the (R, 1024) int8 layout."""
    # TODO(synk): non-ASCII characters are mapped to space here, whereas the
    # original Python path lowercases and keeps them.
    raw = [ord(ch) if ord(ch) < 128 else _PAD_CODE for ch in text]
    n = len(raw)
    rows = max((n + _COLS - 1) // _COLS, 1)
    rows = ((rows + _ROW_ALIGN - 1) // _ROW_ALIGN) * _ROW_ALIGN
    padded = rows * _COLS
    raw = raw + [_PAD_CODE] * (padded - n)
    return jnp.asarray(raw, dtype=jnp.int8).reshape(rows, _COLS)


def text_normalizer_forward(text: str) -> list[str]:
    """Mirrors TextNormalizer.forward semantics up to stemming/lemmatization."""
    codes = encode_text(text)
    normalized_codes = np.asarray(jax.device_get(normalize_chars(codes))).reshape(-1)
    # compaction: drop sentinel (punctuation) positions (data-dependent gather
    # -> host).  Padding spaces are dropped by the whitespace split below.
    kept_chars = [chr(int(c)) for c in normalized_codes if int(c) != _SENTINEL]
    normalized = "".join(kept_chars)
    # whitespace tokenization stands in for nltk.word_tokenize
    tokens = [w for w in normalized.split() if w and w not in punctuation]
    # TODO(synk): SnowballStemmer / WordNetLemmatizer are rule+dictionary based
    # string rewrites with no Pallas equivalent; tokens are returned unstemmed.
    return tokens


if __name__ == "__main__":
    key = jax.random.PRNGKey(0)
    # Small deterministic input: 64 x 1024 printable-ASCII character codes.
    codes = jax.random.randint(key, (64, _COLS), 32, 127, dtype=jnp.int32).astype(jnp.int8)

    out = normalize_chars(codes)
    jax.block_until_ready(out)

    # sanity checks against the reference semantics
    src = np.asarray(jax.device_get(codes)).astype(np.int32)
    res = np.asarray(jax.device_get(out)).astype(np.int32)
    punct_codes = np.array(sorted(ord(c) for c in punctuation))
    src_is_punct = np.isin(src, punct_codes)
    src_is_upper = (src >= 65) & (src <= 90)
    # punctuation positions are rewritten to the sentinel
    assert (res[src_is_punct] == _SENTINEL).all()
    # uppercase letters are lowercased
    assert (res[src_is_upper] == src[src_is_upper] + 32).all()
    # everything else is passed through unchanged
    other = ~src_is_punct & ~src_is_upper
    assert (res[other] == src[other]).all()
    # no uppercase and no punctuation survives in the output
    assert not ((res >= 65) & (res <= 90)).any()
    assert not np.isin(res, punct_codes).any()

    # end-to-end string path through the same kernel
    toks = text_normalizer_forward(
        "Hello, World!  This is a TEST of the Text-Normalizer..."
    )
    assert toks == ["hello", "world", "this", "is", "a", "test", "of",
                    "the", "textnormalizer"], toks

    print("KERNEL_OK")
</pallas_src>

<mosaic_0001>
module attributes {stable_mosaic.version = 11 : i64} {
  func.func @_normalize_kernel(%arg0: i32, %arg1: memref<64x1024xi8, #tpu.memory_space<vmem>>, %arg2: memref<64x1024xi8, #tpu.memory_space<vmem>>) attributes {dimension_semantics = [#tpu.dimension_semantics<parallel>], iteration_bounds = array<i64: 1>, scalar_prefetch = 0 : i64, scratch_operands = 0 : i64, tpu.core_type = #tpu.core_type<tc>, window_params = [{transform_indices = @transform_0, window_bounds = array<i64: 64, 1024>}, {transform_indices = @transform_1, window_bounds = array<i64: 64, 1024>}]} {
    %c0 = arith.constant 0 : index
    %c0_0 = arith.constant 0 : index
    %0 = vector.load %arg1[%c0, %c0_0] : memref<64x1024xi8, #tpu.memory_space<vmem>>, vector<64x1024xi8>
    %1 = arith.extsi %0 : vector<64x1024xi8> to vector<64x1024xi32>
    %c65_i32 = arith.constant 65 : i32
    %2 = vector.broadcast %c65_i32 : i32 to vector<64x1024xi32>
    %3 = arith.cmpi sge, %1, %2 : vector<64x1024xi32>
    %c90_i32 = arith.constant 90 : i32
    %4 = vector.broadcast %c90_i32 : i32 to vector<64x1024xi32>
    %5 = arith.cmpi sle, %1, %4 : vector<64x1024xi32>
    %6 = arith.andi %3, %5 : vector<64x1024xi1>
    %c32_i32 = arith.constant 32 : i32
    %7 = vector.broadcast %c32_i32 : i32 to vector<64x1024xi32>
    %8 = arith.addi %1, %7 : vector<64x1024xi32>
    %9 = arith.select %6, %8, %1 : vector<64x1024xi1>, vector<64x1024xi32>
    %c33_i32 = arith.constant 33 : i32
    %10 = vector.broadcast %c33_i32 : i32 to vector<64x1024xi32>
    %11 = arith.cmpi sge, %9, %10 : vector<64x1024xi32>
    %c47_i32 = arith.constant 47 : i32
    %12 = vector.broadcast %c47_i32 : i32 to vector<64x1024xi32>
    %13 = arith.cmpi sle, %9, %12 : vector<64x1024xi32>
    %14 = arith.andi %11, %13 : vector<64x1024xi1>
    %c58_i32 = arith.constant 58 : i32
    %15 = vector.broadcast %c58_i32 : i32 to vector<64x1024xi32>
    %16 = arith.cmpi sge, %9, %15 : vector<64x1024xi32>
    %c64_i32 = arith.constant 64 : i32
    %17 = vector.broadcast %c64_i32 : i32 to vector<64x1024xi32>
    %18 = arith.cmpi sle, %9, %17 : vector<64x1024xi32>
    %19 = arith.andi %16, %18 : vector<64x1024xi1>
    %20 = arith.ori %14, %19 : vector<64x1024xi1>
    %c91_i32 = arith.constant 91 : i32
    %21 = vector.broadcast %c91_i32 : i32 to vector<64x1024xi32>
    %22 = arith.cmpi sge, %9, %21 : vector<64x1024xi32>
    %c96_i32 = arith.constant 96 : i32
    %23 = vector.broadcast %c96_i32 : i32 to vector<64x1024xi32>
    %24 = arith.cmpi sle, %9, %23 : vector<64x1024xi32>
    %25 = arith.andi %22, %24 : vector<64x1024xi1>
    %26 = arith.ori %20, %25 : vector<64x1024xi1>
    %c123_i32 = arith.constant 123 : i32
    %27 = vector.broadcast %c123_i32 : i32 to vector<64x1024xi32>
    %28 = arith.cmpi sge, %9, %27 : vector<64x1024xi32>
    %c126_i32 = arith.constant 126 : i32
    %29 = vector.broadcast %c126_i32 : i32 to vector<64x1024xi32>
    %30 = arith.cmpi sle, %9, %29 : vector<64x1024xi32>
    %31 = arith.andi %28, %30 : vector<64x1024xi1>
    %32 = arith.ori %26, %31 : vector<64x1024xi1>
    %c0_i32 = arith.constant 0 : i32
    %33 = vector.broadcast %c0_i32 : i32 to vector<64x1024xi32>
    %34 = arith.select %32, %33, %9 : vector<64x1024xi1>, vector<64x1024xi32>
    %35 = arith.trunci %34 : vector<64x1024xi32> to vector<64x1024xi8>
    %c0_1 = arith.constant 0 : index
    %c0_2 = arith.constant 0 : index
    %36 = vector.load %arg2[%c0_1, %c0_2] : memref<64x1024xi8, #tpu.memory_space<vmem>>, vector<64x1024xi8>
    tpu.vector_store %arg2[%c0_1, %c0_2], %35 {strides = array<i32>} : memref<64x1024xi8, #tpu.memory_space<vmem>>, vector<64x1024xi8>,
    return
  }
  func.func @transform_0(%arg0: i32) -> (i32, i32) {
    %c0_i32 = arith.constant 0 : i32
    %c0_i32_0 = arith.constant 0 : i32
    return %arg0, %c0_i32 : i32, i32
  }
  func.func @transform_1(%arg0: i32) -> (i32, i32) {
    %c0_i32 = arith.constant 0 : i32
    %c0_i32_0 = arith.constant 0 : i32
    return %arg0, %c0_i32 : i32, i32
  }
}

</mosaic_0001>

<llo_original>
// kernel: tpu_custom_call.1
$region0: #{tpu_custom_call.1}
  #allocation0 [shape = 'u32[]', space=smem, size = 0x4, offset = 0x4, fixed_abs, tag = 'smem constant byte address 0x4 - core index']
  #allocation1 [shape = 'u32[72,128]{1,0:T(1,128)}', space=vmem, size = 0x9000, scoped, tag = 'internal scratch']
  %s0 = inlined_call_operand.hbm [shape: s8[64,1024], index: 0, kind: input, shape index: {}]
  %s1 = inlined_call_operand.hbm [shape: s8[64,1024], index: 1, kind: output, shape index: {}]
  %s2 = sld [smem:[#allocation0]]
  $region18: #{tpu_custom_call.1} parent=0
    _
  %s4 = ssub.s32 1, %s2
  %s5 = scalar_select 0, %s4, %s2
  $region1: #{tpu_custom_call.1} parent=0
    #allocation2 [shape = 'u8[65536]{0}', space=vmem, size = 0x10000, scoped, tag = 'input window, operand 0, single buffered']
    #allocation3 [shape = 's32[1]{0}', space=sflag, size = 0x4, scoped, tag = 'scoped memory for tpu_custom_call.1']
    #allocation4 [shape = 's32[1]{0}', space=sflag, size = 0x4, scoped, tag = 'scoped memory for tpu_custom_call.1']
    #allocation5 [shape = 'u8[65536]{0}', space=vmem, size = 0x10000, scoped, tag = 'output window, operand 0, single buffered']
    %6 = vsyncpa [#allocation3], 0
    %7 = vsyncpa [#allocation4], 0
    // Predicated region
    $region2: #{tpu_custom_call.1} parent=1 // pred_check
      _
    $region3: #{tpu_custom_call.1} parent=1 // pred_check_branch
      %9 = sbr.rel (0) target = $region5
    $region4: #{tpu_custom_call.1} parent=1 // pred_region
      %11 = vsyncadd [#allocation3], 0
      %s12 = sshll.u32 %s0, 4
      %s13 = int_to_ptr.hbm [resolvable:$true] %s12
      %s14 = sshll.u32 [#allocation2], 4
      %s15 = int_to_ptr.vmem [resolvable:$true] %s14
      %20 = dma.hbm_to_vmem [thread:$0]  %s13, 2048, %s15, [#allocation3], 1024, 1024, 64
    $region5: #{tpu_custom_call.1} parent=1 // pred_fallthru
      _
    // Predicated region
    $region6: #{tpu_custom_call.1} parent=1 // pred_check
      _
    $region7: #{tpu_custom_call.1} parent=1 // pred_check_branch
      %22 = sbr.rel (0) target = $region9
    $region8: #{tpu_custom_call.1} parent=1 // pred_region
      %24 = dma.done [#allocation3], 2048
    $region9: #{tpu_custom_call.1} parent=1 // pred_fallthru
      _
    %v25 = vld [vmem:[#allocation2] sm:$0xff]
    %v26 = vld [vmem:[#allocation2 + $0x8] sm:$0xff]
    %v27 = vld [vmem:[#allocation2 + $0x10] sm:$0xff]
    %v28 = vld [vmem:[#allocation2 + $0x18] sm:$0xff]
    %v29 = vld [vmem:[#allocation2 + $0x20] sm:$0xff]
    %v30 = vld [vmem:[#allocation2 + $0x28] sm:$0xff]
    %v31 = vld [vmem:[#allocation2 + $0x30] sm:$0xff]
    %v32 = vld [vmem:[#allocation2 + $0x38] sm:$0xff]
    %v33 = vld [vmem:[#allocation2 + $0x40] sm:$0xff]
    %v34 = vld [vmem:[#allocation2 + $0x48] sm:$0xff]
    %v35 = vld [vmem:[#allocation2 + $0x50] sm:$0xff]
    %v36 = vld [vmem:[#allocation2 + $0x58] sm:$0xff]
    %v37 = vld [vmem:[#allocation2 + $0x60] sm:$0xff]
    %v38 = vld [vmem:[#allocation2 + $0x68] sm:$0xff]
    %v39 = vld [vmem:[#allocation2 + $0x70] sm:$0xff]
    %v40 = vld [vmem:[#allocation2 + $0x78] sm:$0xff]
    %v41 = vunpack.c.0.s8 %v25
    %v42 = vunpack.c.0.s8 %v26
    %v43 = vunpack.c.0.s8 %v27
    %v44 = vunpack.c.0.s8 %v28
    %v45 = vunpack.c.0.s8 %v29
    %v46 = vunpack.c.0.s8 %v30
    %v47 = vunpack.c.0.s8 %v31
    %v48 = vunpack.c.0.s8 %v32
    %v49 = vunpack.c.1.s8 %v25
    %v50 = vunpack.c.1.s8 %v26
    %v51 = vunpack.c.1.s8 %v27
    %v52 = vunpack.c.1.s8 %v28
    %v53 = vunpack.c.1.s8 %v29
    %v54 = vunpack.c.1.s8 %v30
    %v55 = vunpack.c.1.s8 %v31
    %v56 = vunpack.c.1.s8 %v32
    %v57 = vunpack.c.2.s8 %v25
    %v58 = vunpack.c.2.s8 %v26
    %v59 = vunpack.c.2.s8 %v27
    %v60 = vunpack.c.2.s8 %v28
    %v61 = vunpack.c.2.s8 %v29
    %v62 = vunpack.c.2.s8 %v30
    %v63 = vunpack.c.2.s8 %v31
    %v64 = vunpack.c.2.s8 %v32
    %v65 = vunpack.c.3.s8 %v25
    %v66 = vunpack.c.3.s8 %v26
    %v67 = vunpack.c.3.s8 %v27
    %v68 = vunpack.c.3.s8 %v28
    %v69 = vunpack.c.3.s8 %v29
    %v70 = vunpack.c.3.s8 %v30
    %v71 = vunpack.c.3.s8 %v31
    %v72 = vunpack.c.3.s8 %v32
    %v73 = vunpack.c.0.s8 %v33
    %v74 = vunpack.c.0.s8 %v34
    %v75 = vunpack.c.0.s8 %v35
    %v76 = vunpack.c.0.s8 %v36
    %v77 = vunpack.c.0.s8 %v37
    %v78 = vunpack.c.0.s8 %v38
    %v79 = vunpack.c.0.s8 %v39
    %v80 = vunpack.c.0.s8 %v40
    %v81 = vunpack.c.1.s8 %v33
    %v82 = vunpack.c.1.s8 %v34
    %v83 = vunpack.c.1.s8 %v35
    %v84 = vunpack.c.1.s8 %v36
    %v85 = vunpack.c.1.s8 %v37
    %v86 = vunpack.c.1.s8 %v38
    %v87 = vunpack.c.1.s8 %v39
    %v88 = vunpack.c.1.s8 %v40
    %v89 = vunpack.c.2.s8 %v33
    %v90 = vunpack.c.2.s8 %v34
    %v91 = vunpack.c.2.s8 %v35
    %v92 = vunpack.c.2.s8 %v36
    %v93 = vunpack.c.2.s8 %v37
    %v94 = vunpack.c.2.s8 %v38
    %v95 = vunpack.c.2.s8 %v39
    %v96 = vunpack.c.2.s8 %v40
    %v97 = vunpack.c.3.s8 %v33
    %v98 = vunpack.c.3.s8 %v34
    %v99 = vunpack.c.3.s8 %v35
    %v100 = vunpack.c.3.s8 %v36
    %v101 = vunpack.c.3.s8 %v37
    %v102 = vunpack.c.3.s8 %v38
    %v103 = vunpack.c.3.s8 %v39
    %v104 = vunpack.c.3.s8 %v40
    %vm105 = vcmp.ge.s32.totalorder %v41, 65
    %vm106 = vcmp.ge.s32.totalorder %v42, 65
    %vm107 = vcmp.ge.s32.totalorder %v43, 65
    %vm108 = vcmp.ge.s32.totalorder %v44, 65
    %vm109 = vcmp.ge.s32.totalorder %v45, 65
    %vm110 = vcmp.ge.s32.totalorder %v46, 65
    %vm111 = vcmp.ge.s32.totalorder %v47, 65
    %vm112 = vcmp.ge.s32.totalorder %v48, 65
    %vm113 = vcmp.ge.s32.totalorder %v49, 65
    %vm114 = vcmp.ge.s32.totalorder %v50, 65
    %vm115 = vcmp.ge.s32.totalorder %v51, 65
    %vm116 = vcmp.ge.s32.totalorder %v52, 65
    %vm117 = vcmp.ge.s32.totalorder %v53, 65
    %vm118 = vcmp.ge.s32.totalorder %v54, 65
    %vm119 = vcmp.ge.s32.totalorder %v55, 65
    %vm120 = vcmp.ge.s32.totalorder %v56, 65
    %vm121 = vcmp.ge.s32.totalorder %v57, 65
    %vm122 = vcmp.ge.s32.totalorder %v58, 65
    %vm123 = vcmp.ge.s32.totalorder %v59, 65
    %vm124 = vcmp.ge.s32.totalorder %v60, 65
    %vm125 = vcmp.ge.s32.totalorder %v61, 65
    %vm126 = vcmp.ge.s32.totalorder %v62, 65
    %vm127 = vcmp.ge.s32.totalorder %v63, 65
    %vm128 = vcmp.ge.s32.totalorder %v64, 65
    %vm129 = vcmp.ge.s32.totalorder %v65, 65
    %vm130 = vcmp.ge.s32.totalorder %v66, 65
    %vm131 = vcmp.ge.s32.totalorder %v67, 65
    %vm132 = vcmp.ge.s32.totalorder %v68, 65
    %vm133 = vcmp.ge.s32.totalorder %v69, 65
    %vm134 = vcmp.ge.s32.totalorder %v70, 65
    %vm135 = vcmp.ge.s32.totalorder %v71, 65
    %vm136 = vcmp.ge.s32.totalorder %v72, 65
    %vm137 = vcmp.ge.s32.totalorder %v73, 65
    %vm138 = vcmp.ge.s32.totalorder %v74, 65
    %vm139 = vcmp.ge.s32.totalorder %v75, 65
    %vm140 = vcmp.ge.s32.totalorder %v76, 65
    %vm141 = vcmp.ge.s32.totalorder %v77, 65
    %vm142 = vcmp.ge.s32.totalorder %v78, 65
    %vm143 = vcmp.ge.s32.totalorder %v79, 65
    %vm144 = vcmp.ge.s32.totalorder %v80, 65
    %vm145 = vcmp.ge.s32.totalorder %v81, 65
    %vm146 = vcmp.ge.s32.totalorder %v82, 65
    %vm147 = vcmp.ge.s32.totalorder %v83, 65
    %vm148 = vcmp.ge.s32.totalorder %v84, 65
    %vm149 = vcmp.ge.s32.totalorder %v85, 65
    %vm150 = vcmp.ge.s32.totalorder %v86, 65
    %vm151 = vcmp.ge.s32.totalorder %v87, 65
    %vm152 = vcmp.ge.s32.totalorder %v88, 65
    %vm153 = vcmp.ge.s32.totalorder %v89, 65
    %vm154 = vcmp.ge.s32.totalorder %v90, 65
    %vm155 = vcmp.ge.s32.totalorder %v91, 65
    %vm156 = vcmp.ge.s32.totalorder %v92, 65
    %vm157 = vcmp.ge.s32.totalorder %v93, 65
    %vm158 = vcmp.ge.s32.totalorder %v94, 65
    %vm159 = vcmp.ge.s32.totalorder %v95, 65
    %vm160 = vcmp.ge.s32.totalorder %v96, 65
    %vm161 = vcmp.ge.s32.totalorder %v97, 65
    %vm162 = vcmp.ge.s32.totalorder %v98, 65
    %vm163 = vcmp.ge.s32.totalorder %v99, 65
    %vm164 = vcmp.ge.s32.totalorder %v100, 65
    %vm165 = vcmp.ge.s32.totalorder %v101, 65
    %vm166 = vcmp.ge.s32.totalorder %v102, 65
    %vm167 = vcmp.ge.s32.totalorder %v103, 65
    %vm168 = vcmp.ge.s32.totalorder %v104, 65
    %vm169 = vcmp.le.s32.totalorder %v41, 90
    %vm170 = vcmp.le.s32.totalorder %v42, 90
    %vm171 = vcmp.le.s32.totalorder %v43, 90
    %vm172 = vcmp.le.s32.totalorder %v44, 90
    %vm173 = vcmp.le.s32.totalorder %v45, 90
    %vm174 = vcmp.le.s32.totalorder %v46, 90
    %vm175 = vcmp.le.s32.totalorder %v47, 90
    %vm176 = vcmp.le.s32.totalorder %v48, 90
    %vm177 = vcmp.le.s32.totalorder %v49, 90
    %vm178 = vcmp.le.s32.totalorder %v50, 90
    %vm179 = vcmp.le.s32.totalorder %v51, 90
    %vm180 = vcmp.le.s32.totalorder %v52, 90
    %vm181 = vcmp.le.s32.totalorder %v53, 90
    %vm182 = vcmp.le.s32.totalorder %v54, 90
    %vm183 = vcmp.le.s32.totalorder %v55, 90
    %vm184 = vcmp.le.s32.totalorder %v56, 90
    %vm185 = vcmp.le.s32.totalorder %v57, 90
    %vm186 = vcmp.le.s32.totalorder %v58, 90
    %vm187 = vcmp.le.s32.totalorder %v59, 90
    %vm188 = vcmp.le.s32.totalorder %v60, 90
    %vm189 = vcmp.le.s32.totalorder %v61, 90
    %vm190 = vcmp.le.s32.totalorder %v62, 90
    %vm191 = vcmp.le.s32.totalorder %v63, 90
    %vm192 = vcmp.le.s32.totalorder %v64, 90
    %vm193 = vcmp.le.s32.totalorder %v65, 90
    %vm194 = vcmp.le.s32.totalorder %v66, 90
    %vm195 = vcmp.le.s32.totalorder %v67, 90
    %vm196 = vcmp.le.s32.totalorder %v68, 90
    %vm197 = vcmp.le.s32.totalorder %v69, 90
    %vm198 = vcmp.le.s32.totalorder %v70, 90
    %vm199 = vcmp.le.s32.totalorder %v71, 90
    %vm200 = vcmp.le.s32.totalorder %v72, 90
    %vm201 = vcmp.le.s32.totalorder %v73, 90
    %vm202 = vcmp.le.s32.totalorder %v74, 90
    %vm203 = vcmp.le.s32.totalorder %v75, 90
    %vm204 = vcmp.le.s32.totalorder %v76, 90
    %vm205 = vcmp.le.s32.totalorder %v77, 90
    %vm206 = vcmp.le.s32.totalorder %v78, 90
    %vm207 = vcmp.le.s32.totalorder %v79, 90
    %vm208 = vcmp.le.s32.totalorder %v80, 90
    %vm209 = vcmp.le.s32.totalorder %v81, 90
    %vm210 = vcmp.le.s32.totalorder %v82, 90
    %vm211 = vcmp.le.s32.totalorder %v83, 90
    %vm212 = vcmp.le.s32.totalorder %v84, 90
    %vm213 = vcmp.le.s32.totalorder %v85, 90
    %vm214 = vcmp.le.s32.totalorder %v86, 90
    %vm215 = vcmp.le.s32.totalorder %v87, 90
    %vm216 = vcmp.le.s32.totalorder %v88, 90
    %vm217 = vcmp.le.s32.totalorder %v89, 90
    %vm218 = vcmp.le.s32.totalorder %v90, 90
    %vm219 = vcmp.le.s32.totalorder %v91, 90
    %vm220 = vcmp.le.s32.totalorder %v92, 90
    %vm221 = vcmp.le.s32.totalorder %v93, 90
    %vm222 = vcmp.le.s32.totalorder %v94, 90
    %vm223 = vcmp.le.s32.totalorder %v95, 90
    %vm224 = vcmp.le.s32.totalorder %v96, 90
    %vm225 = vcmp.le.s32.totalorder %v97, 90
    %vm226 = vcmp.le.s32.totalorder %v98, 90
    %vm227 = vcmp.le.s32.totalorder %v99, 90
    %vm228 = vcmp.le.s32.totalorder %v100, 90
    %vm229 = vcmp.le.s32.totalorder %v101, 90
    %vm230 = vcmp.le.s32.totalorder %v102, 90
    %vm231 = vcmp.le.s32.totalorder %v103, 90
    %vm232 = vcmp.le.s32.totalorder %v104, 90
    %vm233 = vmand %vm105, %vm169
    %vm234 = vmand %vm106, %vm170
    %vm235 = vmand %vm107, %vm171
    %vm236 = vmand %vm108, %vm172
    %vm237 = vmand %vm109, %vm173
    %vm238 = vmand %vm110, %vm174
    %vm239 = vmand %vm111, %vm175
    %vm240 = vmand %vm112, %vm176
    %vm241 = vmand %vm113, %vm177
    %vm242 = vmand %vm114, %vm178
    %vm243 = vmand %vm115, %vm179
    %vm244 = vmand %vm116, %vm180
    %vm245 = vmand %vm117, %vm181
    %vm246 = vmand %vm118, %vm182
    %vm247 = vmand %vm119, %vm183
    %vm248 = vmand %vm120, %vm184
    %vm249 = vmand %vm121, %vm185
    %vm250 = vmand %vm122, %vm186
    %vm251 = vmand %vm123, %vm187
    %vm252 = vmand %vm124, %vm188
    %vm253 = vmand %vm125, %vm189
    %vm254 = vmand %vm126, %vm190
    %vm255 = vmand %vm127, %vm191
    %vm256 = vmand %vm128, %vm192
    %vm257 = vmand %vm129, %vm193
    %vm258 = vmand %vm130, %vm194
    %vm259 = vmand %vm131, %vm195
    %vm260 = vmand %vm132, %vm196
    %vm261 = vmand %vm133, %vm197
    %vm262 = vmand %vm134, %vm198
    %vm263 = vmand %vm135, %vm199
    %vm264 = vmand %vm136, %vm200
    %vm265 = vmand %vm137, %vm201
    %vm266 = vmand %vm138, %vm202
    %vm267 = vmand %vm139, %vm203
    %vm268 = vmand %vm140, %vm204
    %vm269 = vmand %vm141, %vm205
    %vm270 = vmand %vm142, %vm206
    %vm271 = vmand %vm143, %vm207
    %vm272 = vmand %vm144, %vm208
    %vm273 = vmand %vm145, %vm209
    %vm274 = vmand %vm146, %vm210
    %vm275 = vmand %vm147, %vm211
    %vm276 = vmand %vm148, %vm212
    %vm277 = vmand %vm149, %vm213
    %vm278 = vmand %vm150, %vm214
    %vm279 = vmand %vm151, %vm215
    %vm280 = vmand %vm152, %vm216
    %vm281 = vmand %vm153, %vm217
    %vm282 = vmand %vm154, %vm218
    %vm283 = vmand %vm155, %vm219
    %vm284 = vmand %vm156, %vm220
    %vm285 = vmand %vm157, %vm221
    %vm286 = vmand %vm158, %vm222
    %vm287 = vmand %vm159, %vm223
    %vm288 = vmand %vm160, %vm224
    %vm289 = vmand %vm161, %vm225
    %vm290 = vmand %vm162, %vm226
    %vm291 = vmand %vm163, %vm227
    %vm292 = vmand %vm164, %vm228
    %vm293 = vmand %vm165, %vm229
    %vm294 = vmand %vm166, %vm230
    %vm295 = vmand %vm167, %vm231
    %vm296 = vmand %vm168, %vm232
    %v297 = vadd.s32 %v41, 32
    %v298 = vadd.s32 %v42, 32
    %v299 = vadd.s32 %v43, 32
    %v300 = vadd.s32 %v44, 32
    %v301 = vadd.s32 %v45, 32
    %v302 = vadd.s32 %v46, 32
    %v303 = vadd.s32 %v47, 32
    %v304 = vadd.s32 %v48, 32
    %v305 = vadd.s32 %v49, 32
    %v306 = vadd.s32 %v50, 32
    %v307 = vadd.s32 %v51, 32
    %v308 = vadd.s32 %v52, 32
    %v309 = vadd.s32 %v53, 32
    %v310 = vadd.s32 %v54, 32
    %v311 = vadd.s32 %v55, 32
    %v312 = vadd.s32 %v56, 32
    %v313 = vadd.s32 %v57, 32
    %v314 = vadd.s32 %v58, 32
    %v315 = vadd.s32 %v59, 32
    %v316 = vadd.s32 %v60, 32
    %v317 = vadd.s32 %v61, 32
    %v318 = vadd.s32 %v62, 32
    %v319 = vadd.s32 %v63, 32
    %v320 = vadd.s32 %v64, 32
    %v321 = vadd.s32 %v65, 32
    %v322 = vadd.s32 %v66, 32
    %v323 = vadd.s32 %v67, 32
    %v324 = vadd.s32 %v68, 32
    %v325 = vadd.s32 %v69, 32
    %v326 = vadd.s32 %v70, 32
    %v327 = vadd.s32 %v71, 32
    %v328 = vadd.s32 %v72, 32
    %v329 = vadd.s32 %v73, 32
    %v330 = vadd.s32 %v74, 32
    %v331 = vadd.s32 %v75, 32
    %v332 = vadd.s32 %v76, 32
    %v333 = vadd.s32 %v77, 32
    %v334 = vadd.s32 %v78, 32
    %v335 = vadd.s32 %v79, 32
    %v336 = vadd.s32 %v80, 32
    %v337 = vadd.s32 %v81, 32
    %v338 = vadd.s32 %v82, 32
    %v339 = vadd.s32 %v83, 32
    %v340 = vadd.s32 %v84, 32
    %v341 = vadd.s32 %v85, 32
    %v342 = vadd.s32 %v86, 32
    %v343 = vadd.s32 %v87, 32
    %v344 = vadd.s32 %v88, 32
    %v345 = vadd.s32 %v89, 32
    %v346 = vadd.s32 %v90, 32
    %v347 = vadd.s32 %v91, 32
    %v348 = vadd.s32 %v92, 32
    %v349 = vadd.s32 %v93, 32
    %v350 = vadd.s32 %v94, 32
    %v351 = vadd.s32 %v95, 32
    %v352 = vadd.s32 %v96, 32
    %v353 = vadd.s32 %v97, 32
    %v354 = vadd.s32 %v98, 32
    %v355 = vadd.s32 %v99, 32
    %v356 = vadd.s32 %v100, 32
    %v357 = vadd.s32 %v101, 32
    %v358 = vadd.s32 %v102, 32
    %v359 = vadd.s32 %v103, 32
    %v360 = vadd.s32 %v104, 32
    %v361 = vsel %vm233, %v297, %v41
    %v362 = vsel %vm234, %v298, %v42
    %v363 = vsel %vm235, %v299, %v43
    %v364 = vsel %vm236, %v300, %v44
    %v365 = vsel %vm237, %v301, %v45
    %v366 = vsel %vm238, %v302, %v46
    %v367 = vsel %vm239, %v303, %v47
    %v368 = vsel %vm240, %v304, %v48
    %v369 = vsel %vm241, %v305, %v49
    %v370 = vsel %vm242, %v306, %v50
    %v371 = vsel %vm243, %v307, %v51
    %v372 = vsel %vm244, %v308, %v52
    %v373 = vsel %vm245, %v309, %v53
    %v374 = vsel %vm246, %v310, %v54
    %v375 = vsel %vm247, %v311, %v55
    %v376 = vsel %vm248, %v312, %v56
    %v377 = vsel %vm249, %v313, %v57
    %v378 = vsel %vm250, %v314, %v58
    %v379 = vsel %vm251, %v315, %v59
    %v380 = vsel %vm252, %v316, %v60
    %v381 = vsel %vm253, %v317, %v61
    %v382 = vsel %vm254, %v318, %v62
    %v383 = vsel %vm255, %v319, %v63
    %v384 = vsel %vm256, %v320, %v64
    %v385 = vsel %vm257, %v321, %v65
    %v386 = vsel %vm258, %v322, %v66
    %v387 = vsel %vm259, %v323, %v67
    %v388 = vsel %vm260, %v324, %v68
    %v389 = vsel %vm261, %v325, %v69
    %v390 = vsel %vm262, %v326, %v70
    %v391 = vsel %vm263, %v327, %v71
    %v392 = vsel %vm264, %v328, %v72
    %v393 = vsel %vm265, %v329, %v73
    %v394 = vsel %vm266, %v330, %v74
    %v395 = vsel %vm267, %v331, %v75
    %v396 = vsel %vm268, %v332, %v76
    %v397 = vsel %vm269, %v333, %v77
    %v398 = vsel %vm270, %v334, %v78
    %v399 = vsel %vm271, %v335, %v79
    %v400 = vsel %vm272, %v336, %v80
    %v401 = vsel %vm273, %v337, %v81
    %v402 = vsel %vm274, %v338, %v82
    %v403 = vsel %vm275, %v339, %v83
    %v404 = vsel %vm276, %v340, %v84
    %v405 = vsel %vm277, %v341, %v85
    %v406 = vsel %vm278, %v342, %v86
    %v407 = vsel %vm279, %v343, %v87
    %v408 = vsel %vm280, %v344, %v88
    %v409 = vsel %vm281, %v345, %v89
    %v410 = vsel %vm282, %v346, %v90
    %v411 = vsel %vm283, %v347, %v91
    %v412 = vsel %vm284, %v348, %v92
    %v413 = vsel %vm285, %v349, %v93
    %v414 = vsel %vm286, %v350, %v94
    %v415 = vsel %vm287, %v351, %v95
    %v416 = vsel %vm288, %v352, %v96
    %v417 = vsel %vm289, %v353, %v97
    %v418 = vsel %vm290, %v354, %v98
    %v419 = vsel %vm291, %v355, %v99
    %v420 = vsel %vm292, %v356, %v100
    %v421 = vsel %vm293, %v357, %v101
    %v422 = vsel %vm294, %v358, %v102
    %v423 = vsel %vm295, %v359, %v103
    %v424 = vsel %vm296, %v360, %v104
    %vm425 = vcmp.ge.s32.totalorder %v361, 33
    %vm426 = vcmp.ge.s32.totalorder %v362, 33
    %vm427 = vcmp.ge.s32.totalorder %v363, 33
    %vm428 = vcmp.ge.s32.totalorder %v364, 33
    %vm429 = vcmp.ge.s32.totalorder %v365, 33
    %vm430 = vcmp.ge.s32.totalorder %v366, 33
    %vm431 = vcmp.ge.s32.totalorder %v367, 33
    %vm432 = vcmp.ge.s32.totalorder %v368, 33
    %vm433 = vcmp.ge.s32.totalorder %v369, 33
    %vm434 = vcmp.ge.s32.totalorder %v370, 33
    %vm435 = vcmp.ge.s32.totalorder %v371, 33
    %vm436 = vcmp.ge.s32.totalorder %v372, 33
    %vm437 = vcmp.ge.s32.totalorder %v373, 33
    %vm438 = vcmp.ge.s32.totalorder %v374, 33
    %vm439 = vcmp.ge.s32.totalorder %v375, 33
    %vm440 = vcmp.ge.s32.totalorder %v376, 33
    %vm441 = vcmp.ge.s32.totalorder %v377, 33
    %vm442 = vcmp.ge.s32.totalorder %v378, 33
    %vm443 = vcmp.ge.s32.totalorder %v379, 33
    %vm444 = vcmp.ge.s32.totalorder %v380, 33
    %vm445 = vcmp.ge.s32.totalorder %v381, 33
    %vm446 = vcmp.ge.s32.totalorder %v382, 33
    %vm447 = vcmp.ge.s32.totalorder %v383, 33
    %vm448 = vcmp.ge.s32.totalorder %v384, 33
    %vm449 = vcmp.ge.s32.totalorder %v385, 33
    %vm450 = vcmp.ge.s32.totalorder %v386, 33
    %vm451 = vcmp.ge.s32.totalorder %v387, 33
    %vm452 = vcmp.ge.s32.totalorder %v388, 33
    %vm453 = vcmp.ge.s32.totalorder %v389, 33
    %vm454 = vcmp.ge.s32.totalorder %v390, 33
    %vm455 = vcmp.ge.s32.totalorder %v391, 33
    %vm456 = vcmp.ge.s32.totalorder %v392, 33
    %vm457 = vcmp.ge.s32.totalorder %v393, 33
    %vm458 = vcmp.ge.s32.totalorder %v394, 33
    %vm459 = vcmp.ge.s32.totalorder %v395, 33
    %vm460 = vcmp.ge.s32.totalorder %v396, 33
    %vm461 = vcmp.ge.s32.totalorder %v397, 33
    %vm462 = vcmp.ge.s32.totalorder %v398, 33
    %vm463 = vcmp.ge.s32.totalorder %v399, 33
    %vm464 = vcmp.ge.s32.totalorder %v400, 33
    %vm465 = vcmp.ge.s32.totalorder %v401, 33
    %vm466 = vcmp.ge.s32.totalorder %v402, 33
    %vm467 = vcmp.ge.s32.totalorder %v403, 33
    %vm468 = vcmp.ge.s32.totalorder %v404, 33
    %vm469 = vcmp.ge.s32.totalorder %v405, 33
    %vm470 = vcmp.ge.s32.totalorder %v406, 33
    %vm471 = vcmp.ge.s32.totalorder %v407, 33
    %vm472 = vcmp.ge.s32.totalorder %v408, 33
    %vm473 = vcmp.ge.s32.totalorder %v409, 33
    %vm474 = vcmp.ge.s32.totalorder %v410, 33
    %vm475 = vcmp.ge.s32.totalorder %v411, 33
    %vm476 = vcmp.ge.s32.totalorder %v412, 33
    %vm477 = vcmp.ge.s32.totalorder %v413, 33
    %vm478 = vcmp.ge.s32.totalorder %v414, 33
    %vm479 = vcmp.ge.s32.totalorder %v415, 33
    %vm480 = vcmp.ge.s32.totalorder %v416, 33
    %vm481 = vcmp.ge.s32.totalorder %v417, 33
    %vm482 = vcmp.ge.s32.totalorder %v418, 33
    %vm483 = vcmp.ge.s32.totalorder %v419, 33
    %vm484 = vcmp.ge.s32.totalorder %v420, 33
    %vm485 = vcmp.ge.s32.totalorder %v421, 33
    %vm486 = vcmp.ge.s32.totalorder %v422, 33
    %vm487 = vcmp.ge.s32.totalorder %v423, 33
    %vm488 = vcmp.ge.s32.totalorder %v424, 33
    %vm489 = vcmp.le.s32.totalorder %v361, 47
    %vm490 = vcmp.le.s32.totalorder %v362, 47
    %vm491 = vcmp.le.s32.totalorder %v363, 47
    %vm492 = vcmp.le.s32.totalorder %v364, 47
    %vm493 = vcmp.le.s32.totalorder %v365, 47
    %vm494 = vcmp.le.s32.totalorder %v366, 47
    %vm495 = vcmp.le.s32.totalorder %v367, 47
    %vm496 = vcmp.le.s32.totalorder %v368, 47
    %vm497 = vcmp.le.s32.totalorder %v369, 47
    %vm498 = vcmp.le.s32.totalorder %v370, 47
    %vm499 = vcmp.le.s32.totalorder %v371, 47
    %vm500 = vcmp.le.s32.totalorder %v372, 47
    %vm501 = vcmp.le.s32.totalorder %v373, 47
    %vm502 = vcmp.le.s32.totalorder %v374, 47
    %vm503 = vcmp.le.s32.totalorder %v375, 47
    %vm504 = vcmp.le.s32.totalorder %v376, 47
    %vm505 = vcmp.le.s32.totalorder %v377, 47
    %vm506 = vcmp.le.s32.totalorder %v378, 47
    %vm507 = vcmp.le.s32.totalorder %v379, 47
    %vm508 = vcmp.le.s32.totalorder %v380, 47
    %vm509 = vcmp.le.s32.totalorder %v381, 47
    %vm510 = vcmp.le.s32.totalorder %v382, 47
    %vm511 = vcmp.le.s32.totalorder %v383, 47
    %vm512 = vcmp.le.s32.totalorder %v384, 47
    %vm513 = vcmp.le.s32.totalorder %v385, 47
    %vm514 = vcmp.le.s32.totalorder %v386, 47
    %vm515 = vcmp.le.s32.totalorder %v387, 47
    %vm516 = vcmp.le.s32.totalorder %v388, 47
    %vm517 = vcmp.le.s32.totalorder %v389, 47
    %vm518 = vcmp.le.s32.totalorder %v390, 47
    %vm519 = vcmp.le.s32.totalorder %v391, 47
    %vm520 = vcmp.le.s32.totalorder %v392, 47
    %vm521 = vcmp.le.s32.totalorder %v393, 47
    %vm522 = vcmp.le.s32.totalorder %v394, 47
    %vm523 = vcmp.le.s32.totalorder %v395, 47
    %vm524 = vcmp.le.s32.totalorder %v396, 47
    %vm525 = vcmp.le.s32.totalorder %v397, 47
    %vm526 = vcmp.le.s32.totalorder %v398, 47
    %vm527 = vcmp.le.s32.totalorder %v399, 47
    %vm528 = vcmp.le.s32.totalorder %v400, 47
    %vm529 = vcmp.le.s32.totalorder %v401, 47
    %vm530 = vcmp.le.s32.totalorder %v402, 47
    %vm531 = vcmp.le.s32.totalorder %v403, 47
    %vm532 = vcmp.le.s32.totalorder %v404, 47
    %vm533 = vcmp.le.s32.totalorder %v405, 47
    %vm534 = vcmp.le.s32.totalorder %v406, 47
    %vm535 = vcmp.le.s32.totalorder %v407, 47
    %vm536 = vcmp.le.s32.totalorder %v408, 47
    %vm537 = vcmp.le.s32.totalorder %v409, 47
    %vm538 = vcmp.le.s32.totalorder %v410, 47
    %vm539 = vcmp.le.s32.totalorder %v411, 47
    %vm540 = vcmp.le.s32.totalorder %v412, 47
    %vm541 = vcmp.le.s32.totalorder %v413, 47
    %vm542 = vcmp.le.s32.totalorder %v414, 47
    %vm543 = vcmp.le.s32.totalorder %v415, 47
    %vm544 = vcmp.le.s32.totalorder %v416, 47
    %vm545 = vcmp.le.s32.totalorder %v417, 47
    %vm546 = vcmp.le.s32.totalorder %v418, 47
    %vm547 = vcmp.le.s32.totalorder %v419, 47
    %vm548 = vcmp.le.s32.totalorder %v420, 47
    %vm549 = vcmp.le.s32.totalorder %v421, 47
    %vm550 = vcmp.le.s32.totalorder %v422, 47
    %vm551 = vcmp.le.s32.totalorder %v423, 47
    %vm552 = vcmp.le.s32.totalorder %v424, 47
    %vm553 = vmand %vm425, %vm489
    %vm554 = vmand %vm426, %vm490
    %vm555 = vmand %vm427, %vm491
    %vm556 = vmand %vm428, %vm492
    %vm557 = vmand %vm429, %vm493
    %vm558 = vmand %vm430, %vm494
    %vm559 = vmand %vm431, %vm495
    %vm560 = vmand %vm432, %vm496
    %vm561 = vmand %vm433, %vm497
    %vm562 = vmand %vm434, %vm498
    %vm563 = vmand %vm435, %vm499
    %vm564 = vmand %vm436, %vm500
    %vm565 = vmand %vm437, %vm501
    %vm566 = vmand %vm438, %vm502
    %vm567 = vmand %vm439, %vm503
    %vm568 = vmand %vm440, %vm504
    %vm569 = vmand %vm441, %vm505
    %vm570 = vmand %vm442, %vm506
    %vm571 = vmand %vm443, %vm507
    %vm572 = vmand %vm444, %vm508
    %vm573 = vmand %vm445, %vm509
    %vm574 = vmand %vm446, %vm510
    %vm575 = vmand %vm447, %vm511
    %vm576 = vmand %vm448, %vm512
    %vm577 = vmand %vm449, %vm513
    %vm578 = vmand %vm450, %vm514
    %vm579 = vmand %vm451, %vm515
    %vm580 = vmand %vm452, %vm516
    %vm581 = vmand %vm453, %vm517
    %vm582 = vmand %vm454, %vm518
    %vm583 = vmand %vm455, %vm519
    %vm584 = vmand %vm456, %vm520
    %vm585 = vmand %vm457, %vm521
    %vm586 = vmand %vm458, %vm522
    %vm587 = vmand %vm459, %vm523
    %vm588 = vmand %vm460, %vm524
    %vm589 = vmand %vm461, %vm525
    %vm590 = vmand %vm462, %vm526
    %vm591 = vmand %vm463, %vm527
    %vm592 = vmand %vm464, %vm528
    %vm593 = vmand %vm465, %vm529
    %vm594 = vmand %vm466, %vm530
    %vm595 = vmand %vm467, %vm531
    %vm596 = vmand %vm468, %vm532
    %vm597 = vmand %vm469, %vm533
    %vm598 = vmand %vm470, %vm534
    %vm599 = vmand %vm471, %vm535
    %vm600 = vmand %vm472, %vm536
    %vm601 = vmand %vm473, %vm537
    %vm602 = vmand %vm474, %vm538
    %vm603 = vmand %vm475, %vm539
    %vm604 = vmand %vm476, %vm540
    %vm605 = vmand %vm477, %vm541
    %vm606 = vmand %vm478, %vm542
    %vm607 = vmand %vm479, %vm543
    %vm608 = vmand %vm480, %vm544
    %vm609 = vmand %vm481, %vm545
    %vm610 = vmand %vm482, %vm546
    %vm611 = vmand %vm483, %vm547
    %vm612 = vmand %vm484, %vm548
    %vm613 = vmand %vm485, %vm549
    %vm614 = vmand %vm486, %vm550
    %vm615 = vmand %vm487, %vm551
    %vm616 = vmand %vm488, %vm552
    %vm617 = vcmp.ge.s32.totalorder %v361, 58
    %vm618 = vcmp.ge.s32.totalorder %v362, 58
    %vm619 = vcmp.ge.s32.totalorder %v363, 58
    %vm620 = vcmp.ge.s32.totalorder %v364, 58
    %vm621 = vcmp.ge.s32.totalorder %v365, 58
    %vm622 = vcmp.ge.s32.totalorder %v366, 58
    %vm623 = vcmp.ge.s32.totalorder %v367, 58
    %vm624 = vcmp.ge.s32.totalorder %v368, 58
    %vm625 = vcmp.ge.s32.totalorder %v369, 58
    %vm626 = vcmp.ge.s32.totalorder %v370, 58
    %vm627 = vcmp.ge.s32.totalorder %v371, 58
    %vm628 = vcmp.ge.s32.totalorder %v372, 58
    %vm629 = vcmp.ge.s32.totalorder %v373, 58
    %vm630 = vcmp.ge.s32.totalorder %v374, 58
    %vm631 = vcmp.ge.s32.totalorder %v375, 58
    %vm632 = vcmp.ge.s32.totalorder %v376, 58
    %vm633 = vcmp.ge.s32.totalorder %v377, 58
    %vm634 = vcmp.ge.s32.totalorder %v378, 58
    %vm635 = vcmp.ge.s32.totalorder %v379, 58
    %vm636 = vcmp.ge.s32.totalorder %v380, 58
    %vm637 = vcmp.ge.s32.totalorder %v381, 58
    %vm638 = vcmp.ge.s32.totalorder %v382, 58
    %vm639 = vcmp.ge.s32.totalorder %v383, 58
    %vm640 = vcmp.ge.s32.totalorder %v384, 58
    %vm641 = vcmp.ge.s32.totalorder %v385, 58
    %vm642 = vcmp.ge.s32.totalorder %v386, 58
    %vm643 = vcmp.ge.s32.totalorder %v387, 58
    %vm644 = vcmp.ge.s32.totalorder %v388, 58
    %vm645 = vcmp.ge.s32.totalorder %v389, 58
    %vm646 = vcmp.ge.s32.totalorder %v390, 58
    %vm647 = vcmp.ge.s32.totalorder %v391, 58
    %vm648 = vcmp.ge.s32.totalorder %v392, 58
    %vm649 = vcmp.ge.s32.totalorder %v393, 58
    %vm650 = vcmp.ge.s32.totalorder %v394, 58
    %vm651 = vcmp.ge.s32.totalorder %v395, 58
    %vm652 = vcmp.ge.s32.totalorder %v396, 58
    %vm653 = vcmp.ge.s32.totalorder %v397, 58
    %vm654 = vcmp.ge.s32.totalorder %v398, 58
    %vm655 = vcmp.ge.s32.totalorder %v399, 58
    %vm656 = vcmp.ge.s32.totalorder %v400, 58
    %vm657 = vcmp.ge.s32.totalorder %v401, 58
    %vm658 = vcmp.ge.s32.totalorder %v402, 58
    %vm659 = vcmp.ge.s32.totalorder %v403, 58
    %vm660 = vcmp.ge.s32.totalorder %v404, 58
    %vm661 = vcmp.ge.s32.totalorder %v405, 58
    %vm662 = vcmp.ge.s32.totalorder %v406, 58
    %vm663 = vcmp.ge.s32.totalorder %v407, 58
    %vm664 = vcmp.ge.s32.totalorder %v408, 58
    %vm665 = vcmp.ge.s32.totalorder %v409, 58
    %vm666 = vcmp.ge.s32.totalorder %v410, 58
    %vm667 = vcmp.ge.s32.totalorder %v411, 58
    %vm668 = vcmp.ge.s32.totalorder %v412, 58
    %vm669 = vcmp.ge.s32.totalorder %v413, 58
    %vm670 = vcmp.ge.s32.totalorder %v414, 58
    %vm671 = vcmp.ge.s32.totalorder %v415, 58
    %vm672 = vcmp.ge.s32.totalorder %v416, 58
    %vm673 = vcmp.ge.s32.totalorder %v417, 58
    %vm674 = vcmp.ge.s32.totalorder %v418, 58
    %vm675 = vcmp.ge.s32.totalorder %v419, 58
    %vm676 = vcmp.ge.s32.totalorder %v420, 58
    %vm677 = vcmp.ge.s32.totalorder %v421, 58
    %vm678 = vcmp.ge.s32.totalorder %v422, 58
    %vm679 = vcmp.ge.s32.totalorder %v423, 58
    %vm680 = vcmp.ge.s32.totalorder %v424, 58
    %vm681 = vcmp.le.s32.totalorder %v361, 64
    %vm682 = vcmp.le.s32.totalorder %v362, 64
    %vm683 = vcmp.le.s32.totalorder %v363, 64
    %vm684 = vcmp.le.s32.totalorder %v364, 64
    %vm685 = vcmp.le.s32.totalorder %v365, 64
    %vm686 = vcmp.le.s32.totalorder %v366, 64
    %vm687 = vcmp.le.s32.totalorder %v367, 64
    %vm688 = vcmp.le.s32.totalorder %v368, 64
    %vm689 = vcmp.le.s32.totalorder %v369, 64
    %vm690 = vcmp.le.s32.totalorder %v370, 64
    %vm691 = vcmp.le.s32.totalorder %v371, 64
    %vm692 = vcmp.le.s32.totalorder %v372, 64
    %vm693 = vcmp.le.s32.totalorder %v373, 64
    %vm694 = vcmp.le.s32.totalorder %v374, 64
    %vm695 = vcmp.le.s32.totalorder %v375, 64
    %vm696 = vcmp.le.s32.totalorder %v376, 64
    %vm697 = vcmp.le.s32.totalorder %v377, 64
    %vm698 = vcmp.le.s32.totalorder %v378, 64
    %vm699 = vcmp.le.s32.totalorder %v379, 64
    %vm700 = vcmp.le.s32.totalorder %v380, 64
    %vm701 = vcmp.le.s32.totalorder %v381, 64
    %vm702 = vcmp.le.s32.totalorder %v382, 64
    %vm703 = vcmp.le.s32.totalorder %v383, 64
    %vm704 = vcmp.le.s32.totalorder %v384, 64
    %vm705 = vcmp.le.s32.totalorder %v385, 64
    %vm706 = vcmp.le.s32.totalorder %v386, 64
    %vm707 = vcmp.le.s32.totalorder %v387, 64
    %vm708 = vcmp.le.s32.totalorder %v388, 64
    %vm709 = vcmp.le.s32.totalorder %v389, 64
    %vm710 = vcmp.le.s32.totalorder %v390, 64
    %vm711 = vcmp.le.s32.totalorder %v391, 64
    %vm712 = vcmp.le.s32.totalorder %v392, 64
    %vm713 = vcmp.le.s32.totalorder %v393, 64
    %vm714 = vcmp.le.s32.totalorder %v394, 64
    %vm715 = vcmp.le.s32.totalorder %v395, 64
    %vm716 = vcmp.le.s32.totalorder %v396, 64
    %vm717 = vcmp.le.s32.totalorder %v397, 64
    %vm718 = vcmp.le.s32.totalorder %v398, 64
    %vm719 = vcmp.le.s32.totalorder %v399, 64
    %vm720 = vcmp.le.s32.totalorder %v400, 64
    %vm721 = vcmp.le.s32.totalorder %v401, 64
    %vm722 = vcmp.le.s32.totalorder %v402, 64
    %vm723 = vcmp.le.s32.totalorder %v403, 64
    %vm724 = vcmp.le.s32.totalorder %v404, 64
    %vm725 = vcmp.le.s32.totalorder %v405, 64
    %vm726 = vcmp.le.s32.totalorder %v406, 64
    %vm727 = vcmp.le.s32.totalorder %v407, 64
    %vm728 = vcmp.le.s32.totalorder %v408, 64
    %vm729 = vcmp.le.s32.totalorder %v409, 64
    %vm730 = vcmp.le.s32.totalorder %v410, 64
    %vm731 = vcmp.le.s32.totalorder %v411, 64
    %vm732 = vcmp.le.s32.totalorder %v412, 64
    %vm733 = vcmp.le.s32.totalorder %v413, 64
    %vm734 = vcmp.le.s32.totalorder %v414, 64
    %vm735 = vcmp.le.s32.totalorder %v415, 64
    %vm736 = vcmp.le.s32.totalorder %v416, 64
    %vm737 = vcmp.le.s32.totalorder %v417, 64
    %vm738 = vcmp.le.s32.totalorder %v418, 64
    %vm739 = vcmp.le.s32.totalorder %v419, 64
    %vm740 = vcmp.le.s32.totalorder %v420, 64
    %vm741 = vcmp.le.s32.totalorder %v421, 64
    %vm742 = vcmp.le.s32.totalorder %v422, 64
    %vm743 = vcmp.le.s32.totalorder %v423, 64
    %vm744 = vcmp.le.s32.totalorder %v424, 64
    %vm745 = vmand %vm617, %vm681
    %vm746 = vmand %vm618, %vm682
    %vm747 = vmand %vm619, %vm683
    %vm748 = vmand %vm620, %vm684
    %vm749 = vmand %vm621, %vm685
    %vm750 = vmand %vm622, %vm686
    %vm751 = vmand %vm623, %vm687
    %vm752 = vmand %vm624, %vm688
    %vm753 = vmand %vm625, %vm689
    %vm754 = vmand %vm626, %vm690
    %vm755 = vmand %vm627, %vm691
    %vm756 = vmand %vm628, %vm692
    %vm757 = vmand %vm629, %vm693
    %vm758 = vmand %vm630, %vm694
    %vm759 = vmand %vm631, %vm695
    %vm760 = vmand %vm632, %vm696
    %vm761 = vmand %vm633, %vm697
    %vm762 = vmand %vm634, %vm698
    %vm763 = vmand %vm635, %vm699
    %vm764 = vmand %vm636, %vm700
    %vm765 = vmand %vm637, %vm701
    %vm766 = vmand %vm638, %vm702
    %vm767 = vmand %vm639, %vm703
    %vm768 = vmand %vm640, %vm704
    %vm769 = vmand %vm641, %vm705
    %vm770 = vmand %vm642, %vm706
    %vm771 = vmand %vm643, %vm707
    %vm772 = vmand %vm644, %vm708
    %vm773 = vmand %vm645, %vm709
    %vm774 = vmand %vm646, %vm710
    %vm775 = vmand %vm647, %vm711
    %vm776 = vmand %vm648, %vm712
    %vm777 = vmand %vm649, %vm713
    %vm778 = vmand %vm650, %vm714
    %vm779 = vmand %vm651, %vm715
    %vm780 = vmand %vm652, %vm716
    %vm781 = vmand %vm653, %vm717
    %vm782 = vmand %vm654, %vm718
    %vm783 = vmand %vm655, %vm719
    %vm784 = vmand %vm656, %vm720
    %vm785 = vmand %vm657, %vm721
    %vm786 = vmand %vm658, %vm722
    %vm787 = vmand %vm659, %vm723
    %vm788 = vmand %vm660, %vm724
    %vm789 = vmand %vm661, %vm725
    %vm790 = vmand %vm662, %vm726
    %vm791 = vmand %vm663, %vm727
    %vm792 = vmand %vm664, %vm728
    %vm793 = vmand %vm665, %vm729
    %vm794 = vmand %vm666, %vm730
    %vm795 = vmand %vm667, %vm731
    %vm796 = vmand %vm668, %vm732
    %vm797 = vmand %vm669, %vm733
    %vm798 = vmand %vm670, %vm734
    %vm799 = vmand %vm671, %vm735
    %vm800 = vmand %vm672, %vm736
    %vm801 = vmand %vm673, %vm737
    %vm802 = vmand %vm674, %vm738
    %vm803 = vmand %vm675, %vm739
    %vm804 = vmand %vm676, %vm740
    %vm805 = vmand %vm677, %vm741
    %vm806 = vmand %vm678, %vm742
    %vm807 = vmand %vm679, %vm743
    %vm808 = vmand %vm680, %vm744
    %vm809 = vmor %vm553, %vm745
    %vm810 = vmor %vm554, %vm746
    %vm811 = vmor %vm555, %vm747
    %vm812 = vmor %vm556, %vm748
    %vm813 = vmor %vm557, %vm749
    %vm814 = vmor %vm558, %vm750
    %vm815 = vmor %vm559, %vm751
    %vm816 = vmor %vm560, %vm752
    %vm817 = vmor %vm561, %vm753
    %vm818 = vmor %vm562, %vm754
    %vm819 = vmor %vm563, %vm755
    %vm820 = vmor %vm564, %vm756
    %vm821 = vmor %vm565, %vm757
    %vm822 = vmor %vm566, %vm758
    %vm823 = vmor %vm567, %vm759
    %vm824 = vmor %vm568, %vm760
    %vm825 = vmor %vm569, %vm761
    %vm826 = vmor %vm570, %vm762
    %vm827 = vmor %vm571, %vm763
    %vm828 = vmor %vm572, %vm764
    %vm829 = vmor %vm573, %vm765
    %vm830 = vmor %vm574, %vm766
    %vm831 = vmor %vm575, %vm767
    %vm832 = vmor %vm576, %vm768
    %vm833 = vmor %vm577, %vm769
    %vm834 = vmor %vm578, %vm770
    %vm835 = vmor %vm579, %vm771
    %vm836 = vmor %vm580, %vm772
    %vm837 = vmor %vm581, %vm773
    %vm838 = vmor %vm582, %vm774
    %vm839 = vmor %vm583, %vm775
    %vm840 = vmor %vm584, %vm776
    %vm841 = vmor %vm585, %vm777
    %vm842 = vmor %vm586, %vm778
    %vm843 = vmor %vm587, %vm779
    %vm844 = vmor %vm588, %vm780
    %vm845 = vmor %vm589, %vm781
    %vm846 = vmor %vm590, %vm782
    %vm847 = vmor %vm591, %vm783
    %vm848 = vmor %vm592, %vm784
    %vm849 = vmor %vm593, %vm785
    %vm850 = vmor %vm594, %vm786
    %vm851 = vmor %vm595, %vm787
    %vm852 = vmor %vm596, %vm788
    %vm853 = vmor %vm597, %vm789
    %vm854 = vmor %vm598, %vm790
    %vm855 = vmor %vm599, %vm791
    %vm856 = vmor %vm600, %vm792
    %vm857 = vmor %vm601, %vm793
    %vm858 = vmor %vm602, %vm794
    %vm859 = vmor %vm603, %vm795
    %vm860 = vmor %vm604, %vm796
    %vm861 = vmor %vm605, %vm797
    %vm862 = vmor %vm606, %vm798
    %vm863 = vmor %vm607, %vm799
    %vm864 = vmor %vm608, %vm800
    %vm865 = vmor %vm609, %vm801
    %vm866 = vmor %vm610, %vm802
    %vm867 = vmor %vm611, %vm803
    %vm868 = vmor %vm612, %vm804
    %vm869 = vmor %vm613, %vm805
    %vm870 = vmor %vm614, %vm806
    %vm871 = vmor %vm615, %vm807
    %vm872 = vmor %vm616, %vm808
    %vm873 = vcmp.ge.s32.totalorder %v361, 91
    %vm874 = vcmp.ge.s32.totalorder %v362, 91
    %vm875 = vcmp.ge.s32.totalorder %v363, 91
    %vm876 = vcmp.ge.s32.totalorder %v364, 91
    %vm877 = vcmp.ge.s32.totalorder %v365, 91
    %vm878 = vcmp.ge.s32.totalorder %v366, 91
    %vm879 = vcmp.ge.s32.totalorder %v367, 91
    %vm880 = vcmp.ge.s32.totalorder %v368, 91
    %vm881 = vcmp.ge.s32.totalorder %v369, 91
    %vm882 = vcmp.ge.s32.totalorder %v370, 91
    %vm883 = vcmp.ge.s32.totalorder %v371, 91
    %vm884 = vcmp.ge.s32.totalorder %v372, 91
    %vm885 = vcmp.ge.s32.totalorder %v373, 91
    %vm886 = vcmp.ge.s32.totalorder %v374, 91
    %vm887 = vcmp.ge.s32.totalorder %v375, 91
    %vm888 = vcmp.ge.s32.totalorder %v376, 91
    %vm889 = vcmp.ge.s32.totalorder %v377, 91
    %vm890 = vcmp.ge.s32.totalorder %v378, 91
    %vm891 = vcmp.ge.s32.totalorder %v379, 91
    %vm892 = vcmp.ge.s32.totalorder %v380, 91
    %vm893 = vcmp.ge.s32.totalorder %v381, 91
    %vm894 = vcmp.ge.s32.totalorder %v382, 91
    %vm895 = vcmp.ge.s32.totalorder %v383, 91
    %vm896 = vcmp.ge.s32.totalorder %v384, 91
    %vm897 = vcmp.ge.s32.totalorder %v385, 91
    %vm898 = vcmp.ge.s32.totalorder %v386, 91
    %vm899 = vcmp.ge.s32.totalorder %v387, 91
    %vm900 = vcmp.ge.s32.totalorder %v388, 91
    %vm901 = vcmp.ge.s32.totalorder %v389, 91
    %vm902 = vcmp.ge.s32.totalorder %v390, 91
    %vm903 = vcmp.ge.s32.totalorder %v391, 91
    %vm904 = vcmp.ge.s32.totalorder %v392, 91
    %vm905 = vcmp.ge.s32.totalorder %v393, 91
    %vm906 = vcmp.ge.s32.totalorder %v394, 91
    %vm907 = vcmp.ge.s32.totalorder %v395, 91
    %vm908 = vcmp.ge.s32.totalorder %v396, 91
    %vm909 = vcmp.ge.s32.totalorder %v397, 91
    %vm910 = vcmp.ge.s32.totalorder %v398, 91
    %vm911 = vcmp.ge.s32.totalorder %v399, 91
    %vm912 = vcmp.ge.s32.totalorder %v400, 91
    %vm913 = vcmp.ge.s32.totalorder %v401, 91
    %vm914 = vcmp.ge.s32.totalorder %v402, 91
    %vm915 = vcmp.ge.s32.totalorder %v403, 91
    %vm916 = vcmp.ge.s32.totalorder %v404, 91
    %vm917 = vcmp.ge.s32.totalorder %v405, 91
    %vm918 = vcmp.ge.s32.totalorder %v406, 91
    %vm919 = vcmp.ge.s32.totalorder %v407, 91
    %vm920 = vcmp.ge.s32.totalorder %v408, 91
    %vm921 = vcmp.ge.s32.totalorder %v409, 91
    %vm922 = vcmp.ge.s32.totalorder %v410, 91
    %vm923 = vcmp.ge.s32.totalorder %v411, 91
    %vm924 = vcmp.ge.s32.totalorder %v412, 91
    %vm925 = vcmp.ge.s32.totalorder %v413, 91
    %vm926 = vcmp.ge.s32.totalorder %v414, 91
    %vm927 = vcmp.ge.s32.totalorder %v415, 91
    %vm928 = vcmp.ge.s32.totalorder %v416, 91
    %vm929 = vcmp.ge.s32.totalorder %v417, 91
    %vm930 = vcmp.ge.s32.totalorder %v418, 91
    %vm931 = vcmp.ge.s32.totalorder %v419, 91
    %vm932 = vcmp.ge.s32.totalorder %v420, 91
    %vm933 = vcmp.ge.s32.totalorder %v421, 91
    %vm934 = vcmp.ge.s32.totalorder %v422, 91
    %vm935 = vcmp.ge.s32.totalorder %v423, 91
    %vm936 = vcmp.ge.s32.totalorder %v424, 91
    %vm937 = vcmp.le.s32.totalorder %v361, 96
    %vm938 = vcmp.le.s32.totalorder %v362, 96
    %vm939 = vcmp.le.s32.totalorder %v363, 96
    %vm940 = vcmp.le.s32.totalorder %v364, 96
    %vm941 = vcmp.le.s32.totalorder %v365, 96
    %vm942 = vcmp.le.s32.totalorder %v366, 96
    %vm943 = vcmp.le.s32.totalorder %v367, 96
    %vm944 = vcmp.le.s32.totalorder %v368, 96
    %vm945 = vcmp.le.s32.totalorder %v369, 96
    %vm946 = vcmp.le.s32.totalorder %v370, 96
    %vm947 = vcmp.le.s32.totalorder %v371, 96
    %vm948 = vcmp.le.s32.totalorder %v372, 96
    %vm949 = vcmp.le.s32.totalorder %v373, 96
    %vm950 = vcmp.le.s32.totalorder %v374, 96
    %vm951 = vcmp.le.s32.totalorder %v375, 96
    %vm952 = vcmp.le.s32.totalorder %v376, 96
    %vm953 = vcmp.le.s32.totalorder %v377, 96
    %vm954 = vcmp.le.s32.totalorder %v378, 96
    %vm955 = vcmp.le.s32.totalorder %v379, 96
    %vm956 = vcmp.le.s32.totalorder %v380, 96
    %vm957 = vcmp.le.s32.totalorder %v381, 96
    %vm958 = vcmp.le.s32.totalorder %v382, 96
    %vm959 = vcmp.le.s32.totalorder %v383, 96
    %vm960 = vcmp.le.s32.totalorder %v384, 96
    %vm961 = vcmp.le.s32.totalorder %v385, 96
    %vm962 = vcmp.le.s32.totalorder %v386, 96
    %vm963 = vcmp.le.s32.totalorder %v387, 96
    %vm964 = vcmp.le.s32.totalorder %v388, 96
    %vm965 = vcmp.le.s32.totalorder %v389, 96
    %vm966 = vcmp.le.s32.totalorder %v390, 96
    %vm967 = vcmp.le.s32.totalorder %v391, 96
    %vm968 = vcmp.le.s32.totalorder %v392, 96
    %vm969 = vcmp.le.s32.totalorder %v393, 96
    %vm970 = vcmp.le.s32.totalorder %v394, 96
    %vm971 = vcmp.le.s32.totalorder %v395, 96
    %vm972 = vcmp.le.s32.totalorder %v396, 96
    %vm973 = vcmp.le.s32.totalorder %v397, 96
    %vm974 = vcmp.le.s32.totalorder %v398, 96
    %vm975 = vcmp.le.s32.totalorder %v399, 96
    %vm976 = vcmp.le.s32.totalorder %v400, 96
    %vm977 = vcmp.le.s32.totalorder %v401, 96
    %vm978 = vcmp.le.s32.totalorder %v402, 96
    %vm979 = vcmp.le.s32.totalorder %v403, 96
    %vm980 = vcmp.le.s32.totalorder %v404, 96
    %vm981 = vcmp.le.s32.totalorder %v405, 96
    %vm982 = vcmp.le.s32.totalorder %v406, 96
    %vm983 = vcmp.le.s32.totalorder %v407, 96
    %vm984 = vcmp.le.s32.totalorder %v408, 96
    %vm985 = vcmp.le.s32.totalorder %v409, 96
    %vm986 = vcmp.le.s32.totalorder %v410, 96
    %vm987 = vcmp.le.s32.totalorder %v411, 96
    %vm988 = vcmp.le.s32.totalorder %v412, 96
    %vm989 = vcmp.le.s32.totalorder %v413, 96
    %vm990 = vcmp.le.s32.totalorder %v414, 96
    %vm991 = vcmp.le.s32.totalorder %v415, 96
    %vm992 = vcmp.le.s32.totalorder %v416, 96
    %vm993 = vcmp.le.s32.totalorder %v417, 96
    %vm994 = vcmp.le.s32.totalorder %v418, 96
    %vm995 = vcmp.le.s32.totalorder %v419, 96
    %vm996 = vcmp.le.s32.totalorder %v420, 96
    %vm997 = vcmp.le.s32.totalorder %v421, 96
    %vm998 = vcmp.le.s32.totalorder %v422, 96
    %vm999 = vcmp.le.s32.totalorder %v423, 96
    %vm1000 = vcmp.le.s32.totalorder %v424, 96
    %vm1001 = vmand %vm873, %vm937
    %vm1002 = vmand %vm874, %vm938
    %vm1003 = vmand %vm875, %vm939
    %vm1004 = vmand %vm876, %vm940
    %vm1005 = vmand %vm877, %vm941
    %vm1006 = vmand %vm878, %vm942
    %vm1007 = vmand %vm879, %vm943
    %vm1008 = vmand %vm880, %vm944
    %vm1009 = vmand %vm881, %vm945
    %vm1010 = vmand %vm882, %vm946
    %vm1011 = vmand %vm883, %vm947
    %vm1012 = vmand %vm884, %vm948
    %vm1013 = vmand %vm885, %vm949
    %vm1014 = vmand %vm886, %vm950
    %vm1015 = vmand %vm887, %vm951
    %vm1016 = vmand %vm888, %vm952
    %vm1017 = vmand %vm889, %vm953
    %vm1018 = vmand %vm890, %vm954
    %vm1019 = vmand %vm891, %vm955
    %vm1020 = vmand %vm892, %vm956
    %vm1021 = vmand %vm893, %vm957
    %vm1022 = vmand %vm894, %vm958
    %vm1023 = vmand %vm895, %vm959
    %vm1024 = vmand %vm896, %vm960
    %vm1025 = vmand %vm897, %vm961
    %vm1026 = vmand %vm898, %vm962
    %vm1027 = vmand %vm899, %vm963
    %vm1028 = vmand %vm900, %vm964
    %vm1029 = vmand %vm901, %vm965
    %vm1030 = vmand %vm902, %vm966
    %vm1031 = vmand %vm903, %vm967
    %vm1032 = vmand %vm904, %vm968
    %vm1033 = vmand %vm905, %vm969
    %vm1034 = vmand %vm906, %vm970
    %vm1035 = vmand %vm907, %vm971
    %vm1036 = vmand %vm908, %vm972
    %vm1037 = vmand %vm909, %vm973
    %vm1038 = vmand %vm910, %vm974
    %vm1039 = vmand %vm911, %vm975
    %vm1040 = vmand %vm912, %vm976
    %vm1041 = vmand %vm913, %vm977
    %vm1042 = vmand %vm914, %vm978
    %vm1043 = vmand %vm915, %vm979
    %vm1044 = vmand %vm916, %vm980
    %vm1045 = vmand %vm917, %vm981
    %vm1046 = vmand %vm918, %vm982
    %vm1047 = vmand %vm919, %vm983
    %vm1048 = vmand %vm920, %vm984
    %vm1049 = vmand %vm921, %vm985
    %vm1050 = vmand %vm922, %vm986
    %vm1051 = vmand %vm923, %vm987
    %vm1052 = vmand %vm924, %vm988
    %vm1053 = vmand %vm925, %vm989
    %vm1054 = vmand %vm926, %vm990
    %vm1055 = vmand %vm927, %vm991
    %vm1056 = vmand %vm928, %vm992
    %vm1057 = vmand %vm929, %vm993
    %vm1058 = vmand %vm930, %vm994
    %vm1059 = vmand %vm931, %vm995
    %vm1060 = vmand %vm932, %vm996
    %vm1061 = vmand %vm933, %vm997
    %vm1062 = vmand %vm934, %vm998
    %vm1063 = vmand %vm935, %vm999
    %vm1064 = vmand %vm936, %vm1000
    %vm1065 = vmor %vm809, %vm1001
    %vm1066 = vmor %vm810, %vm1002
    %vm1067 = vmor %vm811, %vm1003
    %vm1068 = vmor %vm812, %vm1004
    %vm1069 = vmor %vm813, %vm1005
    %vm1070 = vmor %vm814, %vm1006
    %vm1071 = vmor %vm815, %vm1007
    %vm1072 = vmor %vm816, %vm1008
    %vm1073 = vmor %vm817, %vm1009
    %vm1074 = vmor %vm818, %vm1010
    %vm1075 = vmor %vm819, %vm1011
    %vm1076 = vmor %vm820, %vm1012
    %vm1077 = vmor %vm821, %vm1013
    %vm1078 = vmor %vm822, %vm1014
    %vm1079 = vmor %vm823, %vm1015
    %vm1080 = vmor %vm824, %vm1016
    %vm1081 = vmor %vm825, %vm1017
    %vm1082 = vmor %vm826, %vm1018
    %vm1083 = vmor %vm827, %vm1019
    %vm1084 = vmor %vm828, %vm1020
    %vm1085 = vmor %vm829, %vm1021
    %vm1086 = vmor %vm830, %vm1022
    %vm1087 = vmor %vm831, %vm1023
    %vm1088 = vmor %vm832, %vm1024
    %vm1089 = vmor %vm833, %vm1025
    %vm1090 = vmor %vm834, %vm1026
    %vm1091 = vmor %vm835, %vm1027
    %vm1092 = vmor %vm836, %vm1028
    %vm1093 = vmor %vm837, %vm1029
    %vm1094 = vmor %vm838, %vm1030
    %vm1095 = vmor %vm839, %vm1031
    %vm1096 = vmor %vm840, %vm1032
    %vm1097 = vmor %vm841, %vm1033
    %vm1098 = vmor %vm842, %vm1034
    %vm1099 = vmor %vm843, %vm1035
    %vm1100 = vmor %vm844, %vm1036
    %vm1101 = vmor %vm845, %vm1037
    %vm1102 = vmor %vm846, %vm1038
    %vm1103 = vmor %vm847, %vm1039
    %vm1104 = vmor %vm848, %vm1040
    %vm1105 = vmor %vm849, %vm1041
    %vm1106 = vmor %vm850, %vm1042
    %vm1107 = vmor %vm851, %vm1043
    %vm1108 = vmor %vm852, %vm1044
    %vm1109 = vmor %vm853, %vm1045
    %vm1110 = vmor %vm854, %vm1046
    %vm1111 = vmor %vm855, %vm1047
    %vm1112 = vmor %vm856, %vm1048
    %vm1113 = vmor %vm857, %vm1049
    %vm1114 = vmor %vm858, %vm1050
    %vm1115 = vmor %vm859, %vm1051
    %vm1116 = vmor %vm860, %vm1052
    %vm1117 = vmor %vm861, %vm1053
    %vm1118 = vmor %vm862, %vm1054
    %vm1119 = vmor %vm863, %vm1055
    %vm1120 = vmor %vm864, %vm1056
    %vm1121 = vmor %vm865, %vm1057
    %vm1122 = vmor %vm866, %vm1058
    %vm1123 = vmor %vm867, %vm1059
    %vm1124 = vmor %vm868, %vm1060
    %vm1125 = vmor %vm869, %vm1061
    %vm1126 = vmor %vm870, %vm1062
    %vm1127 = vmor %vm871, %vm1063
    %vm1128 = vmor %vm872, %vm1064
    %vm1129 = vcmp.ge.s32.totalorder %v361, 123
    %vm1130 = vcmp.ge.s32.totalorder %v362, 123
    %vm1131 = vcmp.ge.s32.totalorder %v363, 123
    %vm1132 = vcmp.ge.s32.totalorder %v364, 123
    %vm1133 = vcmp.ge.s32.totalorder %v365, 123
    %vm1134 = vcmp.ge.s32.totalorder %v366, 123
    %vm1135 = vcmp.ge.s32.totalorder %v367, 123
    %vm1136 = vcmp.ge.s32.totalorder %v368, 123
    %vm1137 = vcmp.ge.s32.totalorder %v369, 123
    %vm1138 = vcmp.ge.s32.totalorder %v370, 123
    %vm1139 = vcmp.ge.s32.totalorder %v371, 123
    %vm1140 = vcmp.ge.s32.totalorder %v372, 123
    %vm1141 = vcmp.ge.s32.totalorder %v373, 123
    %vm1142 = vcmp.ge.s32.totalorder %v374, 123
    %vm1143 = vcmp.ge.s32.totalorder %v375, 123
    %vm1144 = vcmp.ge.s32.totalorder %v376, 123
    %vm1145 = vcmp.ge.s32.totalorder %v377, 123
    %vm1146 = vcmp.ge.s32.totalorder %v378, 123
    %vm1147 = vcmp.ge.s32.totalorder %v379, 123
    %vm1148 = vcmp.ge.s32.totalorder %v380, 123
    %vm1149 = vcmp.ge.s32.totalorder %v381, 123
    %vm1150 = vcmp.ge.s32.totalorder %v382, 123
    %vm1151 = vcmp.ge.s32.totalorder %v383, 123
    %vm1152 = vcmp.ge.s32.totalorder %v384, 123
    %vm1153 = vcmp.ge.s32.totalorder %v385, 123
    %vm1154 = vcmp.ge.s32.totalorder %v386, 123
    %vm1155 = vcmp.ge.s32.totalorder %v387, 123
    %vm1156 = vcmp.ge.s32.totalorder %v388, 123
    %vm1157 = vcmp.ge.s32.totalorder %v389, 123
    %vm1158 = vcmp.ge.s32.totalorder %v390, 123
    %vm1159 = vcmp.ge.s32.totalorder %v391, 123
    %vm1160 = vcmp.ge.s32.totalorder %v392, 123
    %vm1161 = vcmp.ge.s32.totalorder %v393, 123
    %vm1162 = vcmp.ge.s32.totalorder %v394, 123
    %vm1163 = vcmp.ge.s32.totalorder %v395, 123
    %vm1164 = vcmp.ge.s32.totalorder %v396, 123
    %vm1165 = vcmp.ge.s32.totalorder %v397, 123
    %vm1166 = vcmp.ge.s32.totalorder %v398, 123
    %vm1167 = vcmp.ge.s32.totalorder %v399, 123
    %vm1168 = vcmp.ge.s32.totalorder %v400, 123
    %vm1169 = vcmp.ge.s32.totalorder %v401, 123
    %vm1170 = vcmp.ge.s32.totalorder %v402, 123
    %vm1171 = vcmp.ge.s32.totalorder %v403, 123
    %vm1172 = vcmp.ge.s32.totalorder %v404, 123
    %vm1173 = vcmp.ge.s32.totalorder %v405, 123
    %vm1174 = vcmp.ge.s32.totalorder %v406, 123
    %vm1175 = vcmp.ge.s32.totalorder %v407, 123
    %vm1176 = vcmp.ge.s32.totalorder %v408, 123
    %vm1177 = vcmp.ge.s32.totalorder %v409, 123
    %vm1178 = vcmp.ge.s32.totalorder %v410, 123
    %vm1179 = vcmp.ge.s32.totalorder %v411, 123
    %vm1180 = vcmp.ge.s32.totalorder %v412, 123
    %vm1181 = vcmp.ge.s32.totalorder %v413, 123
    %vm1182 = vcmp.ge.s32.totalorder %v414, 123
    %vm1183 = vcmp.ge.s32.totalorder %v415, 123
    %vm1184 = vcmp.ge.s32.totalorder %v416, 123
    %vm1185 = vcmp.ge.s32.totalorder %v417, 123
    %vm1186 = vcmp.ge.s32.totalorder %v418, 123
    %vm1187 = vcmp.ge.s32.totalorder %v419, 123
    %vm1188 = vcmp.ge.s32.totalorder %v420, 123
    %vm1189 = vcmp.ge.s32.totalorder %v421, 123
    %vm1190 = vcmp.ge.s32.totalorder %v422, 123
    %vm1191 = vcmp.ge.s32.totalorder %v423, 123
    %vm1192 = vcmp.ge.s32.totalorder %v424, 123
    %vm1193 = vcmp.le.s32.totalorder %v361, 126
    %vm1194 = vcmp.le.s32.totalorder %v362, 126
    %vm1195 = vcmp.le.s32.totalorder %v363, 126
    %vm1196 = vcmp.le.s32.totalorder %v364, 126
    %vm1197 = vcmp.le.s32.totalorder %v365, 126
    %vm1198 = vcmp.le.s32.totalorder %v366, 126
    %vm1199 = vcmp.le.s32.totalorder %v367, 126
    %vm1200 = vcmp.le.s32.totalorder %v368, 126
    %vm1201 = vcmp.le.s32.totalorder %v369, 126
    %vm1202 = vcmp.le.s32.totalorder %v370, 126
    %vm1203 = vcmp.le.s32.totalorder %v371, 126
    %vm1204 = vcmp.le.s32.totalorder %v372, 126
    %vm1205 = vcmp.le.s32.totalorder %v373, 126
    %vm1206 = vcmp.le.s32.totalorder %v374, 126
    %vm1207 = vcmp.le.s32.totalorder %v375, 126
    %vm1208 = vcmp.le.s32.totalorder %v376, 126
    %vm1209 = vcmp.le.s32.totalorder %v377, 126
    %vm1210 = vcmp.le.s32.totalorder %v378, 126
    %vm1211 = vcmp.le.s32.totalorder %v379, 126
    %vm1212 = vcmp.le.s32.totalorder %v380, 126
    %vm1213 = vcmp.le.s32.totalorder %v381, 126
    %vm1214 = vcmp.le.s32.totalorder %v382, 126
    %vm1215 = vcmp.le.s32.totalorder %v383, 126
    %vm1216 = vcmp.le.s32.totalorder %v384, 126
    %vm1217 = vcmp.le.s32.totalorder %v385, 126
    %vm1218 = vcmp.le.s32.totalorder %v386, 126
    %vm1219 = vcmp.le.s32.totalorder %v387, 126
    %vm1220 = vcmp.le.s32.totalorder %v388, 126
    %vm1221 = vcmp.le.s32.totalorder %v389, 126
    %vm1222 = vcmp.le.s32.totalorder %v390, 126
    %vm1223 = vcmp.le.s32.totalorder %v391, 126
    %vm1224 = vcmp.le.s32.totalorder %v392, 126
    %vm1225 = vcmp.le.s32.totalorder %v393, 126
    %vm1226 = vcmp.le.s32.totalorder %v394, 126
    %vm1227 = vcmp.le.s32.totalorder %v395, 126
    %vm1228 = vcmp.le.s32.totalorder %v396, 126
    %vm1229 = vcmp.le.s32.totalorder %v397, 126
    %vm1230 = vcmp.le.s32.totalorder %v398, 126
    %vm1231 = vcmp.le.s32.totalorder %v399, 126
    %vm1232 = vcmp.le.s32.totalorder %v400, 126
    %vm1233 = vcmp.le.s32.totalorder %v401, 126
    %vm1234 = vcmp.le.s32.totalorder %v402, 126
    %vm1235 = vcmp.le.s32.totalorder %v403, 126
    %vm1236 = vcmp.le.s32.totalorder %v404, 126
    %vm1237 = vcmp.le.s32.totalorder %v405, 126
    %vm1238 = vcmp.le.s32.totalorder %v406, 126
    %vm1239 = vcmp.le.s32.totalorder %v407, 126
    %vm1240 = vcmp.le.s32.totalorder %v408, 126
    %vm1241 = vcmp.le.s32.totalorder %v409, 126
    %vm1242 = vcmp.le.s32.totalorder %v410, 126
    %vm1243 = vcmp.le.s32.totalorder %v411, 126
    %vm1244 = vcmp.le.s32.totalorder %v412, 126
    %vm1245 = vcmp.le.s32.totalorder %v413, 126
    %vm1246 = vcmp.le.s32.totalorder %v414, 126
    %vm1247 = vcmp.le.s32.totalorder %v415, 126
    %vm1248 = vcmp.le.s32.totalorder %v416, 126
    %vm1249 = vcmp.le.s32.totalorder %v417, 126
    %vm1250 = vcmp.le.s32.totalorder %v418, 126
    %vm1251 = vcmp.le.s32.totalorder %v419, 126
    %vm1252 = vcmp.le.s32.totalorder %v420, 126
    %vm1253 = vcmp.le.s32.totalorder %v421, 126
    %vm1254 = vcmp.le.s32.totalorder %v422, 126
    %vm1255 = vcmp.le.s32.totalorder %v423, 126
    %vm1256 = vcmp.le.s32.totalorder %v424, 126
    %vm1257 = vmand %vm1129, %vm1193
    %vm1258 = vmand %vm1130, %vm1194
    %vm1259 = vmand %vm1131, %vm1195
    %vm1260 = vmand %vm1132, %vm1196
    %vm1261 = vmand %vm1133, %vm1197
    %vm1262 = vmand %vm1134, %vm1198
    %vm1263 = vmand %vm1135, %vm1199
    %vm1264 = vmand %vm1136, %vm1200
    %vm1265 = vmand %vm1137, %vm1201
    %vm1266 = vmand %vm1138, %vm1202
    %vm1267 = vmand %vm1139, %vm1203
    %vm1268 = vmand %vm1140, %vm1204
    %vm1269 = vmand %vm1141, %vm1205
    %vm1270 = vmand %vm1142, %vm1206
    %vm1271 = vmand %vm1143, %vm1207
    %vm1272 = vmand %vm1144, %vm1208
    %vm1273 = vmand %vm1145, %vm1209
    %vm1274 = vmand %vm1146, %vm1210
    %vm1275 = vmand %vm1147, %vm1211
    %vm1276 = vmand %vm1148, %vm1212
    %vm1277 = vmand %vm1149, %vm1213
    %vm1278 = vmand %vm1150, %vm1214
    %vm1279 = vmand %vm1151, %vm1215
    %vm1280 = vmand %vm1152, %vm1216
    %vm1281 = vmand %vm1153, %vm1217
    %vm1282 = vmand %vm1154, %vm1218
    %vm1283 = vmand %vm1155, %vm1219
    %vm1284 = vmand %vm1156, %vm1220
    %vm1285 = vmand %vm1157, %vm1221
    %vm1286 = vmand %vm1158, %vm1222
    %vm1287 = vmand %vm1159, %vm1223
    %vm1288 = vmand %vm1160, %vm1224
    %vm1289 = vmand %vm1161, %vm1225
    %vm1290 = vmand %vm1162, %vm1226
    %vm1291 = vmand %vm1163, %vm1227
    %vm1292 = vmand %vm1164, %vm1228
    %vm1293 = vmand %vm1165, %vm1229
    %vm1294 = vmand %vm1166, %vm1230
    %vm1295 = vmand %vm1167, %vm1231
    %vm1296 = vmand %vm1168, %vm1232
    %vm1297 = vmand %vm1169, %vm1233
    %vm1298 = vmand %vm1170, %vm1234
    %vm1299 = vmand %vm1171, %vm1235
    %vm1300 = vmand %vm1172, %vm1236
    %vm1301 = vmand %vm1173, %vm1237
    %vm1302 = vmand %vm1174, %vm1238
    %vm1303 = vmand %vm1175, %vm1239
    %vm1304 = vmand %vm1176, %vm1240
    %vm1305 = vmand %vm1177, %vm1241
    %vm1306 = vmand %vm1178, %vm1242
    %vm1307 = vmand %vm1179, %vm1243
    %vm1308 = vmand %vm1180, %vm1244
    %vm1309 = vmand %vm1181, %vm1245
    %vm1310 = vmand %vm1182, %vm1246
    %vm1311 = vmand %vm1183, %vm1247
    %vm1312 = vmand %vm1184, %vm1248
    %vm1313 = vmand %vm1185, %vm1249
    %vm1314 = vmand %vm1186, %vm1250
    %vm1315 = vmand %vm1187, %vm1251
    %vm1316 = vmand %vm1188, %vm1252
    %vm1317 = vmand %vm1189, %vm1253
    %vm1318 = vmand %vm1190, %vm1254
    %vm1319 = vmand %vm1191, %vm1255
    %vm1320 = vmand %vm1192, %vm1256
    %vm1321 = vmor %vm1065, %vm1257
    %vm1322 = vmor %vm1066, %vm1258
    %vm1323 = vmor %vm1067, %vm1259
    %vm1324 = vmor %vm1068, %vm1260
    %vm1325 = vmor %vm1069, %vm1261
    %vm1326 = vmor %vm1070, %vm1262
    %vm1327 = vmor %vm1071, %vm1263
    %vm1328 = vmor %vm1072, %vm1264
    %vm1329 = vmor %vm1073, %vm1265
    %vm1330 = vmor %vm1074, %vm1266
    %vm1331 = vmor %vm1075, %vm1267
    %vm1332 = vmor %vm1076, %vm1268
    %vm1333 = vmor %vm1077, %vm1269
    %vm1334 = vmor %vm1078, %vm1270
    %vm1335 = vmor %vm1079, %vm1271
    %vm1336 = vmor %vm1080, %vm1272
    %vm1337 = vmor %vm1081, %vm1273
    %vm1338 = vmor %vm1082, %vm1274
    %vm1339 = vmor %vm1083, %vm1275
    %vm1340 = vmor %vm1084, %vm1276
    %vm1341 = vmor %vm1085, %vm1277
    %vm1342 = vmor %vm1086, %vm1278
    %vm1343 = vmor %vm1087, %vm1279
    %vm1344 = vmor %vm1088, %vm1280
    %vm1345 = vmor %vm1089, %vm1281
    %vm1346 = vmor %vm1090, %vm1282
    %vm1347 = vmor %vm1091, %vm1283
    %vm1348 = vmor %vm1092, %vm1284
    %vm1349 = vmor %vm1093, %vm1285
    %vm1350 = vmor %vm1094, %vm1286
    %vm1351 = vmor %vm1095, %vm1287
    %vm1352 = vmor %vm1096, %vm1288
    %vm1353 = vmor %vm1097, %vm1289
    %vm1354 = vmor %vm1098, %vm1290
    %vm1355 = vmor %vm1099, %vm1291
    %vm1356 = vmor %vm1100, %vm1292
    %vm1357 = vmor %vm1101, %vm1293
    %vm1358 = vmor %vm1102, %vm1294
    %vm1359 = vmor %vm1103, %vm1295
    %vm1360 = vmor %vm1104, %vm1296
    %vm1361 = vmor %vm1105, %vm1297
    %vm1362 = vmor %vm1106, %vm1298
    %vm1363 = vmor %vm1107, %vm1299
    %vm1364 = vmor %vm1108, %vm1300
    %vm1365 = vmor %vm1109, %vm1301
    %vm1366 = vmor %vm1110, %vm1302
    %vm1367 = vmor %vm1111, %vm1303
    %vm1368 = vmor %vm1112, %vm1304
    %vm1369 = vmor %vm1113, %vm1305
    %vm1370 = vmor %vm1114, %vm1306
    %vm1371 = vmor %vm1115, %vm1307
    %vm1372 = vmor %vm1116, %vm1308
    %vm1373 = vmor %vm1117, %vm1309
    %vm1374 = vmor %vm1118, %vm1310
    %vm1375 = vmor %vm1119, %vm1311
    %vm1376 = vmor %vm1120, %vm1312
    %vm1377 = vmor %vm1121, %vm1313
    %vm1378 = vmor %vm1122, %vm1314
    %vm1379 = vmor %vm1123, %vm1315
    %vm1380 = vmor %vm1124, %vm1316
    %vm1381 = vmor %vm1125, %vm1317
    %vm1382 = vmor %vm1126, %vm1318
    %vm1383 = vmor %vm1127, %vm1319
    %vm1384 = vmor %vm1128, %vm1320
    %v1385 = vsel %vm1321, 0, %v361
    %v1386 = vsel %vm1322, 0, %v362
    %v1387 = vsel %vm1323, 0, %v363
    %v1388 = vsel %vm1324, 0, %v364
    %v1389 = vsel %vm1325, 0, %v365
    %v1390 = vsel %vm1326, 0, %v366
    %v1391 = vsel %vm1327, 0, %v367
    %v1392 = vsel %vm1328, 0, %v368
    %v1393 = vsel %vm1329, 0, %v369
    %v1394 = vsel %vm1330, 0, %v370
    %v1395 = vsel %vm1331, 0, %v371
    %v1396 = vsel %vm1332, 0, %v372
    %v1397 = vsel %vm1333, 0, %v373
    %v1398 = vsel %vm1334, 0, %v374
    %v1399 = vsel %vm1335, 0, %v375
    %v1400 = vsel %vm1336, 0, %v376
    %v1401 = vsel %vm1337, 0, %v377
    %v1402 = vsel %vm1338, 0, %v378
    %v1403 = vsel %vm1339, 0, %v379
    %v1404 = vsel %vm1340, 0, %v380
    %v1405 = vsel %vm1341, 0, %v381
    %v1406 = vsel %vm1342, 0, %v382
    %v1407 = vsel %vm1343, 0, %v383
    %v1408 = vsel %vm1344, 0, %v384
    %v1409 = vsel %vm1345, 0, %v385
    %v1410 = vsel %vm1346, 0, %v386
    %v1411 = vsel %vm1347, 0, %v387
    %v1412 = vsel %vm1348, 0, %v388
    %v1413 = vsel %vm1349, 0, %v389
    %v1414 = vsel %vm1350, 0, %v390
    %v1415 = vsel %vm1351, 0, %v391
    %v1416 = vsel %vm1352, 0, %v392
    %v1417 = vsel %vm1353, 0, %v393
    %v1418 = vsel %vm1354, 0, %v394
    %v1419 = vsel %vm1355, 0, %v395
    %v1420 = vsel %vm1356, 0, %v396
    %v1421 = vsel %vm1357, 0, %v397
    %v1422 = vsel %vm1358, 0, %v398
    %v1423 = vsel %vm1359, 0, %v399
    %v1424 = vsel %vm1360, 0, %v400
    %v1425 = vsel %vm1361, 0, %v401
    %v1426 = vsel %vm1362, 0, %v402
    %v1427 = vsel %vm1363, 0, %v403
    %v1428 = vsel %vm1364, 0, %v404
    %v1429 = vsel %vm1365, 0, %v405
    %v1430 = vsel %vm1366, 0, %v406
    %v1431 = vsel %vm1367, 0, %v407
    %v1432 = vsel %vm1368, 0, %v408
    %v1433 = vsel %vm1369, 0, %v409
    %v1434 = vsel %vm1370, 0, %v410
    %v1435 = vsel %vm1371, 0, %v411
    %v1436 = vsel %vm1372, 0, %v412
    %v1437 = vsel %vm1373, 0, %v413
    %v1438 = vsel %vm1374, 0, %v414
    %v1439 = vsel %vm1375, 0, %v415
    %v1440 = vsel %vm1376, 0, %v416
    %v1441 = vsel %vm1377, 0, %v417
    %v1442 = vsel %vm1378, 0, %v418
    %v1443 = vsel %vm1379, 0, %v419
    %v1444 = vsel %vm1380, 0, %v420
    %v1445 = vsel %vm1381, 0, %v421
    %v1446 = vsel %vm1382, 0, %v422
    %v1447 = vsel %vm1383, 0, %v423
    %v1448 = vsel %vm1384, 0, %v424
    %v1449 = vpack.c.b16 %v1393, %v1385
    %v1450 = vpack.c.b16 %v1409, %v1401
    %v1451 = vpack.c.b8 %v1450, %v1449
    %v1452 = vpack.c.b16 %v1394, %v1386
    %v1453 = vpack.c.b16 %v1410, %v1402
    %v1454 = vpack.c.b8 %v1453, %v1452
    %v1455 = vpack.c.b16 %v1395, %v1387
    %v1456 = vpack.c.b16 %v1411, %v1403
    %v1457 = vpack.c.b8 %v1456, %v1455
    %v1458 = vpack.c.b16 %v1396, %v1388
    %v1459 = vpack.c.b16 %v1412, %v1404
    %v1460 = vpack.c.b8 %v1459, %v1458
    %v1461 = vpack.c.b16 %v1397, %v1389
    %v1462 = vpack.c.b16 %v1413, %v1405
    %v1463 = vpack.c.b8 %v1462, %v1461
    %v1464 = vpack.c.b16 %v1398, %v1390
    %v1465 = vpack.c.b16 %v1414, %v1406
    %v1466 = vpack.c.b8 %v1465, %v1464
    %v1467 = vpack.c.b16 %v1399, %v1391
    %v1468 = vpack.c.b16 %v1415, %v1407
    %v1469 = vpack.c.b8 %v1468, %v1467
    %v1470 = vpack.c.b16 %v1400, %v1392
    %v1471 = vpack.c.b16 %v1416, %v1408
    %v1472 = vpack.c.b8 %v1471, %v1470
    %v1473 = vpack.c.b16 %v1425, %v1417
    %v1474 = vpack.c.b16 %v1441, %v1433
    %v1475 = vpack.c.b8 %v1474, %v1473
    %v1476 = vpack.c.b16 %v1426, %v1418
    %v1477 = vpack.c.b16 %v1442, %v1434
    %v1478 = vpack.c.b8 %v1477, %v1476
    %v1479 = vpack.c.b16 %v1427, %v1419
    %v1480 = vpack.c.b16 %v1443, %v1435
    %v1481 = vpack.c.b8 %v1480, %v1479
    %v1482 = vpack.c.b16 %v1428, %v1420
    %v1483 = vpack.c.b16 %v1444, %v1436
    %v1484 = vpack.c.b8 %v1483, %v1482
    %v1485 = vpack.c.b16 %v1429, %v1421
    %v1486 = vpack.c.b16 %v1445, %v1437
    %v1487 = vpack.c.b8 %v1486, %v1485
    %v1488 = vpack.c.b16 %v1430, %v1422
    %v1489 = vpack.c.b16 %v1446, %v1438
    %v1490 = vpack.c.b8 %v1489, %v1488
    %v1491 = vpack.c.b16 %v1431, %v1423
    %v1492 = vpack.c.b16 %v1447, %v1439
    %v1493 = vpack.c.b8 %v1492, %v1491
    %v1494 = vpack.c.b16 %v1432, %v1424
    %v1495 = vpack.c.b16 %v1448, %v1440
    %v1496 = vpack.c.b8 %v1495, %v1494
    %1497 = vst [vmem:[#allocation5] sm:$0xff] %v1451
    %1498 = vst [vmem:[#allocation5 + $0x8] sm:$0xff] %v1454
    %1499 = vst [vmem:[#allocation5 + $0x10] sm:$0xff] %v1457
    %1500 = vst [vmem:[#allocation5 + $0x18] sm:$0xff] %v1460
    %1501 = vst [vmem:[#allocation5 + $0x20] sm:$0xff] %v1463
    %1502 = vst [vmem:[#allocation5 + $0x28] sm:$0xff] %v1466
    %1503 = vst [vmem:[#allocation5 + $0x30] sm:$0xff] %v1469
    %1504 = vst [vmem:[#allocation5 + $0x38] sm:$0xff] %v1472
    %1505 = vst [vmem:[#allocation5 + $0x40] sm:$0xff] %v1475
    %1506 = vst [vmem:[#allocation5 + $0x48] sm:$0xff] %v1478
    %1507 = vst [vmem:[#allocation5 + $0x50] sm:$0xff] %v1481
    %1508 = vst [vmem:[#allocation5 + $0x58] sm:$0xff] %v1484
    %1509 = vst [vmem:[#allocation5 + $0x60] sm:$0xff] %v1487
    %1510 = vst [vmem:[#allocation5 + $0x68] sm:$0xff] %v1490
    %1511 = vst [vmem:[#allocation5 + $0x70] sm:$0xff] %v1493
    %1512 = vst [vmem:[#allocation5 + $0x78] sm:$0xff] %v1496
    // Predicated region
    $region10: #{tpu_custom_call.1} parent=1 // pred_check
      _
    $region11: #{tpu_custom_call.1} parent=1 // pred_check_branch
      %1514 = sbr.rel (0) target = $region13
    $region12: #{tpu_custom_call.1} parent=1 // pred_region
      %1516 = vsyncadd [#allocation4], 0
      %s1517 = sshll.u32 [#allocation5], 4
      %s1518 = int_to_ptr.vmem [resolvable:$true] %s1517
      %s1519 = sshll.u32 %s1, 4
      %s1520 = int_to_ptr.hbm [resolvable:$true] %s1519
      %1525 = dma.vmem_to_hbm [thread:$0]  %s1518, 2048, %s1520, [#allocation4], 1024, 1024, 64
    $region13: #{tpu_custom_call.1} parent=1 // pred_fallthru
      _
    // Predicated region
    $region14: #{tpu_custom_call.1} parent=1 // pred_check
      _
    $region15: #{tpu_custom_call.1} parent=1 // pred_check_branch
      %1527 = sbr.rel (0) target = $region17
    $region16: #{tpu_custom_call.1} parent=1 // pred_region
      %1529 = dma.done [#allocation4], 2048
    $region17: #{tpu_custom_call.1} parent=1 // pred_fallthru
      _
    %1530 = vsyncpa [#allocation3], 1
    %1531 = vsyncpa [#allocation4], 1

</llo_original>
